<compile_context>
chip_gen: v7x
topology: tpu7x:2x2x1
jax: 0.10.0
libtpu: 0.0.40
codegen_flags: <defaults>
</compile_context>

<pallas_src>
import functools
import math

import jax
import jax.numpy as jnp
from jax import lax
from jax.experimental import pallas as pl
from jax.experimental.pallas import tpu as pltpu

# ---- problem sizes (small, consistent with the module) ----
B = 2          # batch
L = 8          # sequence length
D_MODEL = 32
D_INNER = 64
N_HEAD = 4
D_K = 8
D_V = 8
EPS = 1e-5     # nn.LayerNorm default


def _layer_norm(y, gamma, beta, eps=EPS):
    mu = jnp.mean(y, axis=-1, keepdims=True)
    var = jnp.mean(jnp.square(y - mu), axis=-1, keepdims=True)
    return (y - mu) * lax.rsqrt(var + eps) * gamma + beta


def encoder_layer_kernel(
    x_ref, npm_ref, mask_ref, wslab_ref, w2_ref, vec_ref,   # 6 input operands
    out_ref, attn_ref,                                      # outputs
    qkv_hm_ref, ctx_ref,                                    # VMEM scratch
    *, batch, seq, n_head, d_k, d_v, d_model, d_inner,
):
    rows = batch * seq
    dqkv = 2 * d_k + d_v               # per-head [q | k | v] block width
    hqkv = n_head * dqkv
    hb = n_head * batch

    x = x_ref[...].reshape(rows, d_model)        # (B*L, d_model)
    npm = npm_ref[...].reshape(rows, 1)          # (B*L, 1)
    vecs = vec_ref[...]                          # (8, 96) packed bias / LN vectors
    wslab = wslab_ref[...]                       # (32, 192) = [wqkv | fc_w | w1]

    # ---- fused, head-interleaved QKV projection (1/sqrt(d_k) pre-folded into Wq) ----
    qkv = jnp.dot(x, wslab[:, :hqkv],
                  preferred_element_type=jnp.float32) + vecs[0:1, :hqkv]   # (B*L, 96)

    # ---- regroup rows (b,l) -> head-major (h,b,l): 4 static-slice stores, no transpose ----
    for h in range(n_head):
        qkv_hm_ref[h * rows:(h + 1) * rows, :] = qkv[:, h * dqkv:(h + 1) * dqkv]
    qkv_hm = qkv_hm_ref[...]                                    # (H*B*L, 24)
    q = qkv_hm[:, :d_k].reshape(hb, seq, d_k)                   # (H*B, L, d_k)
    k = qkv_hm[:, d_k:2 * d_k].reshape(hb, seq, d_k)
    v = qkv_hm[:, 2 * d_k:].reshape(hb, seq, d_v)

    # ---- one batched score matmul + one softmax over all (head, batch) pairs ----
    # Note: a fully-masked row yields a uniform distribution here, whereas PyTorch's
    # masked_fill(-inf) yields NaN; such rows are degenerate in the reference module anyway.
    bias = jnp.where(mask_ref[...] > 0, -1e30, 0.0)                         # (B, L, L)
    bias = jnp.broadcast_to(bias, (n_head, batch, seq, seq)).reshape(hb, seq, seq)
    s = jnp.einsum('bqd,bkd->bqk', q, k,
                   preferred_element_type=jnp.float32) + bias               # (H*B, L, L)
    p = jnp.exp(s - jnp.max(s, axis=-1, keepdims=True))
    p = p / jnp.sum(p, axis=-1, keepdims=True)      # exact normalization (attn is returned)
    attn_ref[...] = p                               # head-major output, single store

    # ---- one batched P@V matmul; scatter head blocks into the context scratch ----
    o = jnp.einsum('bqk,bkd->bqd', p, v, preferred_element_type=jnp.float32)  # (H*B, L, d_v)
    for h in range(n_head):
        ctx_ref[:, h * d_v:(h + 1) * d_v] = o[h * batch:(h + 1) * batch].reshape(rows, d_v)

    # ---- output projection, residual, LayerNorm ----
    fc_w = wslab[:, hqkv:hqkv + d_model]                        # (n_head*d_v, d_model)
    fc_out = jnp.dot(ctx_ref[...], fc_w,
                     preferred_element_type=jnp.float32) + vecs[1:2, :d_model]
    attn_out = _layer_norm(fc_out + x, vecs[2:3, :d_model], vecs[3:4, :d_model])

    # ---- EncoderLayer: mask after attention ----
    y = attn_out * npm

    # ---- PositionwiseFeedForward (Conv1d k=1 == per-position Linear) ----
    w1 = wslab[:, hqkv + d_model:hqkv + d_model + d_inner]
    h1 = jnp.maximum(
        jnp.dot(y, w1, preferred_element_type=jnp.float32) + vecs[4:5, :d_inner], 0.0)
    h2 = jnp.dot(h1, w2_ref[...], preferred_element_type=jnp.float32) + vecs[5:6, :d_model]
    ffn_out = _layer_norm(h2 + y, vecs[6:7, :d_model], vecs[7:8, :d_model])

    # ---- mask after FFN ----
    out_ref[...] = (ffn_out * npm).reshape(batch, seq, d_model)


def prep_params(params):
    """ONE-TIME parameter packing (done at init, never per call)."""
    (wq, bq, wk, bk, wv, bv, fc_w, fc_b, ln1_g, ln1_b,
     w1, b1, w2, b2, ln2_g, ln2_b) = params
    inv_temp = 1.0 / math.sqrt(D_K)
    # Head-interleaved fused QKV weight: per-head blocks [Wq_h/sqrt(d_k) | Wk_h | Wv_h].
    wblk, bblk = [], []
    for h in range(N_HEAD):
        wblk += [wq[:, h * D_K:(h + 1) * D_K] * inv_temp,
                 wk[:, h * D_K:(h + 1) * D_K],
                 wv[:, h * D_V:(h + 1) * D_V]]
        bblk += [bq[:, h * D_K:(h + 1) * D_K] * inv_temp,
                 bk[:, h * D_K:(h + 1) * D_K],
                 bv[:, h * D_V:(h + 1) * D_V]]
    wqkv = jnp.concatenate(wblk, axis=1)                       # (32, 96)
    bqkv = jnp.concatenate(bblk, axis=1)                       # (1, 96)
    # All 32-row weights stacked into one slab (d_model == n_head*d_v == 32 here).
    w_slab = jnp.concatenate([wqkv, fc_w, w1], axis=1)         # (32, 192)
    vec_w = wqkv.shape[1]                                      # 96 (>= d_inner)

    def pad(vrow):
        return jnp.pad(vrow, ((0, 0), (0, vec_w - vrow.shape[1])))

    vec_slab = jnp.concatenate(
        [pad(bqkv), pad(fc_b), pad(ln1_g), pad(ln1_b),
         pad(b1), pad(b2), pad(ln2_g), pad(ln2_b)], axis=0)    # (8, 96)
    return w_slab, w2, vec_slab


@jax.jit
def encoder_layer(x, non_pad_mask, slf_attn_mask, w_slab, w2, vec_slab):
    """x: (B, L, d_model). Returns (enc_output (B,L,d_model), attn (n_head*B, L, L))."""
    Bz, Lz, Dz = x.shape
    kernel = functools.partial(
        encoder_layer_kernel, batch=Bz, seq=Lz, n_head=N_HEAD,
        d_k=D_K, d_v=D_V, d_model=Dz, d_inner=D_INNER)
    out_shape = (
        jax.ShapeDtypeStruct((Bz, Lz, Dz), jnp.float32),            # enc_output
        jax.ShapeDtypeStruct((N_HEAD * Bz, Lz, Lz), jnp.float32),   # attn, head-major
    )
    # Grid-less single invocation: every operand is a whole-array VMEM block.
    return pl.pallas_call(
        kernel,
        out_shape=out_shape,
        scratch_shapes=[
            pltpu.VMEM((N_HEAD * Bz * Lz, 2 * D_K + D_V), jnp.float32),  # head-major qkv
            pltpu.VMEM((Bz * Lz, N_HEAD * D_V), jnp.float32),            # context (heads concat)
        ],
    )(x, non_pad_mask, slf_attn_mask, w_slab, w2, vec_slab)


def make_params(key):
    ks = jax.random.split(key, 8)
    s = 0.05
    wq = jax.random.normal(ks[0], (D_MODEL, N_HEAD * D_K), jnp.float32) * s
    wk = jax.random.normal(ks[1], (D_MODEL, N_HEAD * D_K), jnp.float32) * s
    wv = jax.random.normal(ks[2], (D_MODEL, N_HEAD * D_V), jnp.float32) * s
    fc_w = jax.random.normal(ks[3], (N_HEAD * D_V, D_MODEL), jnp.float32) * s
    w1 = jax.random.normal(ks[4], (D_MODEL, D_INNER), jnp.float32) * s
    w2 = jax.random.normal(ks[5], (D_INNER, D_MODEL), jnp.float32) * s
    bq = jax.random.normal(ks[6], (1, N_HEAD * D_K), jnp.float32) * s
    bk = jnp.zeros((1, N_HEAD * D_K), jnp.float32)
    bv = jnp.zeros((1, N_HEAD * D_V), jnp.float32)
    fc_b = jax.random.normal(ks[7], (1, D_MODEL), jnp.float32) * s
    b1 = jnp.zeros((1, D_INNER), jnp.float32)
    b2 = jnp.zeros((1, D_MODEL), jnp.float32)
    ln1_g = jnp.ones((1, D_MODEL), jnp.float32)
    ln1_b = jnp.zeros((1, D_MODEL), jnp.float32)
    ln2_g = jnp.ones((1, D_MODEL), jnp.float32)
    ln2_b = jnp.zeros((1, D_MODEL), jnp.float32)
    return [wq, bq, wk, bk, wv, bv, fc_w, fc_b, ln1_g, ln1_b,
            w1, b1, w2, b2, ln2_g, ln2_b]


def reference(x, npm, mask, params):
    (wq, bq, wk, bk, wv, bv, fc_w, fc_b, ln1_g, ln1_b,
     w1, b1, w2, b2, ln2_g, ln2_b) = params
    q = x @ wq + bq[0]
    k = x @ wk + bk[0]
    v = x @ wv + bv[0]
    q = q.reshape(B, L, N_HEAD, D_K).transpose(0, 2, 1, 3)
    k = k.reshape(B, L, N_HEAD, D_K).transpose(0, 2, 1, 3)
    v = v.reshape(B, L, N_HEAD, D_V).transpose(0, 2, 1, 3)
    s = jnp.einsum('bhqd,bhkd->bhqk', q, k) / math.sqrt(D_K)
    s = jnp.where(mask[:, None] > 0, -1e30, s)
    p = jax.nn.softmax(s, axis=-1)
    o = jnp.einsum('bhqk,bhkd->bhqd', p, v)
    o = o.transpose(0, 2, 1, 3).reshape(B, L, N_HEAD * D_V)
    o = o @ fc_w + fc_b[0]
    o = _layer_norm(o + x, ln1_g[0], ln1_b[0])
    o = o * npm
    h = jnp.maximum(o @ w1 + b1[0], 0.0)
    h = h @ w2 + b2[0]
    out = _layer_norm(h + o, ln2_g[0], ln2_b[0]) * npm
    attn = jnp.transpose(p, (1, 0, 2, 3)).reshape(N_HEAD * B, L, L)
    return out, attn


if __name__ == "__main__":
    key = jax.random.PRNGKey(0)
    kx, kp = jax.random.split(key)
    x = jax.random.normal(kx, (B, L, D_MODEL), jnp.float32)

    # last 2 positions of batch 1 are padding
    valid = jnp.array([[1.0] * L, [1.0] * (L - 2) + [0.0, 0.0]], jnp.float32)  # (B, L)
    non_pad_mask = valid[:, :, None]                                           # (B, L, 1)
    slf_attn_mask = (1.0 - valid)[:, None, :] * jnp.ones((B, L, 1), jnp.float32)  # (B, L, L)

    params = make_params(kp)
    w_slab, w2_op, vec_slab = prep_params(params)   # one-time param prep, not per call

    enc_out, attn = encoder_layer(x, non_pad_mask, slf_attn_mask, w_slab, w2_op, vec_slab)
    jax.block_until_ready((enc_out, attn))

    ref_out, ref_attn = reference(x, non_pad_mask, slf_attn_mask, params)
    # 1e-3 tolerance absorbs f32-matmul precision differences between the in-kernel MXU
    # dots and the XLA reference; softmax normalization itself is exact.
    assert jnp.allclose(enc_out, ref_out, atol=1e-3, rtol=1e-3)
    assert jnp.allclose(attn, ref_attn, atol=1e-3, rtol=1e-3)
    print("KERNEL_OK")
</pallas_src>

<mosaic_0001>
module attributes {stable_mosaic.version = 11 : i64} {
  func.func @encoder_layer_kernel(%arg0: memref<2x8x32xf32, #tpu.memory_space<vmem>>, %arg1: memref<2x8x1xf32, #tpu.memory_space<vmem>>, %arg2: memref<2x8x8xf32, #tpu.memory_space<vmem>>, %arg3: memref<32x192xf32, #tpu.memory_space<vmem>>, %arg4: memref<64x32xf32, #tpu.memory_space<vmem>>, %arg5: memref<8x96xf32, #tpu.memory_space<vmem>>, %arg6: memref<2x8x32xf32, #tpu.memory_space<vmem>>, %arg7: memref<8x8x8xf32, #tpu.memory_space<vmem>>, %arg8: memref<64x24xf32, #tpu.memory_space<vmem>>, %arg9: memref<16x32xf32, #tpu.memory_space<vmem>>) attributes {dimension_semantics = [], scalar_prefetch = 0 : i64, scratch_operands = 2 : i64, tpu.core_type = #tpu.core_type<tc>} {
    %c0 = arith.constant 0 : index
    %c0_0 = arith.constant 0 : index
    %c0_1 = arith.constant 0 : index
    %0 = vector.load %arg0[%c0, %c0_0, %c0_1] : memref<2x8x32xf32, #tpu.memory_space<vmem>>, vector<2x8x32xf32>
    %1 = vector.shape_cast %0 : vector<2x8x32xf32> to vector<16x32xf32>
    %c0_2 = arith.constant 0 : index
    %c0_3 = arith.constant 0 : index
    %c0_4 = arith.constant 0 : index
    %2 = vector.load %arg1[%c0_2, %c0_3, %c0_4] : memref<2x8x1xf32, #tpu.memory_space<vmem>>, vector<2x8x1xf32>
    %3 = vector.shape_cast %2 : vector<2x8x1xf32> to vector<16x1xf32>
    %c0_5 = arith.constant 0 : index
    %c0_6 = arith.constant 0 : index
    %4 = vector.load %arg5[%c0_5, %c0_6] : memref<8x96xf32, #tpu.memory_space<vmem>>, vector<8x96xf32>
    %c0_7 = arith.constant 0 : index
    %c0_8 = arith.constant 0 : index
    %5 = vector.load %arg3[%c0_7, %c0_8] : memref<32x192xf32, #tpu.memory_space<vmem>>, vector<32x192xf32>
    %6 = vector.extract_strided_slice %5 {offsets = [0, 0], sizes = [32, 96], strides = [1, 1]} : vector<32x192xf32> to vector<32x96xf32>
    %cst = arith.constant dense<0.000000e+00> : vector<16x96xf32>
    %7 = tpu.matmul %1, %6, %cst {dimension_numbers = #tpu.dot_dimension_numbers<[1], [0], [0], [1], [0, 0, 1, 1], [], []>} : vector<16x32xf32>, vector<32x96xf32>, vector<16x96xf32> -> vector<16x96xf32>
    %8 = vector.extract_strided_slice %4 {offsets = [0, 0], sizes = [1, 96], strides = [1, 1]} : vector<8x96xf32> to vector<1x96xf32>
    %9 = vector.broadcast %8 : vector<1x96xf32> to vector<16x96xf32>
    %10 = arith.addf %7, %9 : vector<16x96xf32>
    %11 = vector.extract_strided_slice %10 {offsets = [0, 0], sizes = [16, 24], strides = [1, 1]} : vector<16x96xf32> to vector<16x24xf32>
    %c0_9 = arith.constant 0 : index
    %c0_10 = arith.constant 0 : index
    %12 = vector.load %arg8[%c0_9, %c0_10] : memref<64x24xf32, #tpu.memory_space<vmem>>, vector<16x24xf32>
    tpu.vector_store %arg8[%c0_9, %c0_10], %11 {strides = array<i32>} : memref<64x24xf32, #tpu.memory_space<vmem>>, vector<16x24xf32>,
    %13 = vector.extract_strided_slice %10 {offsets = [0, 24], sizes = [16, 24], strides = [1, 1]} : vector<16x96xf32> to vector<16x24xf32>
    %c16 = arith.constant 16 : index
    %c0_11 = arith.constant 0 : index
    %14 = vector.load %arg8[%c16, %c0_11] : memref<64x24xf32, #tpu.memory_space<vmem>>, vector<16x24xf32>
    tpu.vector_store %arg8[%c16, %c0_11], %13 {strides = array<i32>} : memref<64x24xf32, #tpu.memory_space<vmem>>, vector<16x24xf32>,
    %15 = vector.extract_strided_slice %10 {offsets = [0, 48], sizes = [16, 24], strides = [1, 1]} : vector<16x96xf32> to vector<16x24xf32>
    %c32 = arith.constant 32 : index
    %c0_12 = arith.constant 0 : index
    %16 = vector.load %arg8[%c32, %c0_12] : memref<64x24xf32, #tpu.memory_space<vmem>>, vector<16x24xf32>
    tpu.vector_store %arg8[%c32, %c0_12], %15 {strides = array<i32>} : memref<64x24xf32, #tpu.memory_space<vmem>>, vector<16x24xf32>,
    %17 = vector.extract_strided_slice %10 {offsets = [0, 72], sizes = [16, 24], strides = [1, 1]} : vector<16x96xf32> to vector<16x24xf32>
    %c48 = arith.constant 48 : index
    %c0_13 = arith.constant 0 : index
    %18 = vector.load %arg8[%c48, %c0_13] : memref<64x24xf32, #tpu.memory_space<vmem>>, vector<16x24xf32>
    tpu.vector_store %arg8[%c48, %c0_13], %17 {strides = array<i32>} : memref<64x24xf32, #tpu.memory_space<vmem>>, vector<16x24xf32>,
    %c0_14 = arith.constant 0 : index
    %c0_15 = arith.constant 0 : index
    %19 = vector.load %arg8[%c0_14, %c0_15] : memref<64x24xf32, #tpu.memory_space<vmem>>, vector<64x24xf32>
    %20 = vector.extract_strided_slice %19 {offsets = [0, 0], sizes = [64, 8], strides = [1, 1]} : vector<64x24xf32> to vector<64x8xf32>
    %21 = vector.shape_cast %20 : vector<64x8xf32> to vector<8x8x8xf32>
    %22 = vector.extract_strided_slice %19 {offsets = [0, 8], sizes = [64, 8], strides = [1, 1]} : vector<64x24xf32> to vector<64x8xf32>
    %23 = vector.shape_cast %22 : vector<64x8xf32> to vector<8x8x8xf32>
    %24 = vector.extract_strided_slice %19 {offsets = [0, 16], sizes = [64, 8], strides = [1, 1]} : vector<64x24xf32> to vector<64x8xf32>
    %25 = vector.shape_cast %24 : vector<64x8xf32> to vector<8x8x8xf32>
    %c0_16 = arith.constant 0 : index
    %c0_17 = arith.constant 0 : index
    %c0_18 = arith.constant 0 : index
    %26 = vector.load %arg2[%c0_16, %c0_17, %c0_18] : memref<2x8x8xf32, #tpu.memory_space<vmem>>, vector<2x8x8xf32>
    %cst_19 = arith.constant 0.000000e+00 : f32
    %27 = vector.broadcast %cst_19 : f32 to vector<2x8x8xf32>
    %28 = arith.cmpf ogt, %26, %27 : vector<2x8x8xf32>
    %cst_20 = arith.constant -1.000000e+30 : f32
    %cst_21 = arith.constant 0.000000e+00 : f32
    %29 = vector.broadcast %cst_20 : f32 to vector<2x8x8xf32>
    %30 = vector.broadcast %cst_21 : f32 to vector<2x8x8xf32>
    %31 = arith.select %28, %29, %30 : vector<2x8x8xi1>, vector<2x8x8xf32>
    %32 = vector.shape_cast %31 : vector<2x8x8xf32> to vector<1x2x8x8xf32>
    %33 = vector.broadcast %32 : vector<1x2x8x8xf32> to vector<4x2x8x8xf32>
    %34 = vector.shape_cast %33 : vector<4x2x8x8xf32> to vector<8x8x8xf32>
    "tpu.trace_start"() <{level = 10 : i32, message = "bqd,bkd->bqk"}> : () -> ()
    %cst_22 = arith.constant dense<0.000000e+00> : vector<8x8x8xf32>
    %35 = tpu.matmul %21, %23, %cst_22 {dimension_numbers = #tpu.dot_dimension_numbers<[2], [2], [1], [1], [0, 0, 0, 1, 1, 1], [0], [0]>} : vector<8x8x8xf32>, vector<8x8x8xf32>, vector<8x8x8xf32> -> vector<8x8x8xf32>
    "tpu.trace_stop"() : () -> ()
    %36 = arith.addf %35, %34 : vector<8x8x8xf32>
    %cst_23 = arith.constant dense<0xFF800000> : vector<8x8xf32>
    %37 = vector.multi_reduction <maximumf>, %36, %cst_23 [2] : vector<8x8x8xf32> to vector<8x8xf32>
    %38 = vector.shape_cast %37 : vector<8x8xf32> to vector<8x8x1xf32>
    %39 = vector.broadcast %38 : vector<8x8x1xf32> to vector<8x8x8xf32>
    %40 = arith.subf %36, %39 : vector<8x8x8xf32>
    %41 = math.exp %40 : vector<8x8x8xf32>
    %cst_24 = arith.constant dense<0.000000e+00> : vector<8x8xf32>
    %42 = vector.multi_reduction <add>, %41, %cst_24 [2] : vector<8x8x8xf32> to vector<8x8xf32>
    %43 = vector.shape_cast %42 : vector<8x8xf32> to vector<8x8x1xf32>
    %44 = vector.broadcast %43 : vector<8x8x1xf32> to vector<8x8x8xf32>
    %45 = arith.divf %41, %44 : vector<8x8x8xf32>
    %c0_25 = arith.constant 0 : index
    %c0_26 = arith.constant 0 : index
    %c0_27 = arith.constant 0 : index
    %46 = vector.load %arg7[%c0_25, %c0_26, %c0_27] : memref<8x8x8xf32, #tpu.memory_space<vmem>>, vector<8x8x8xf32>
    tpu.vector_store %arg7[%c0_25, %c0_26, %c0_27], %45 {strides = array<i32>} : memref<8x8x8xf32, #tpu.memory_space<vmem>>, vector<8x8x8xf32>,
    "tpu.trace_start"() <{level = 10 : i32, message = "bqk,bkd->bqd"}> : () -> ()
    %cst_28 = arith.constant dense<0.000000e+00> : vector<8x8x8xf32>
    %47 = tpu.matmul %45, %25, %cst_28 {dimension_numbers = #tpu.dot_dimension_numbers<[2], [1], [1], [2], [0, 0, 0, 1, 1, 2], [0], [0]>} : vector<8x8x8xf32>, vector<8x8x8xf32>, vector<8x8x8xf32> -> vector<8x8x8xf32>
    "tpu.trace_stop"() : () -> ()
    %48 = vector.extract_strided_slice %47 {offsets = [0, 0, 0], sizes = [2, 8, 8], strides = [1, 1, 1]} : vector<8x8x8xf32> to vector<2x8x8xf32>
    %49 = vector.shape_cast %48 : vector<2x8x8xf32> to vector<16x8xf32>
    %c0_29 = arith.constant 0 : index
    %c0_30 = arith.constant 0 : index
    %50 = vector.load %arg9[%c0_29, %c0_30] : memref<16x32xf32, #tpu.memory_space<vmem>>, vector<16x8xf32>
    tpu.vector_store %arg9[%c0_29, %c0_30], %49 {strides = array<i32>} : memref<16x32xf32, #tpu.memory_space<vmem>>, vector<16x8xf32>,
    %51 = vector.extract_strided_slice %47 {offsets = [2, 0, 0], sizes = [2, 8, 8], strides = [1, 1, 1]} : vector<8x8x8xf32> to vector<2x8x8xf32>
    %52 = vector.shape_cast %51 : vector<2x8x8xf32> to vector<16x8xf32>
    %c0_31 = arith.constant 0 : index
    %c8 = arith.constant 8 : index
    %53 = vector.load %arg9[%c0_31, %c8] : memref<16x32xf32, #tpu.memory_space<vmem>>, vector<16x8xf32>
    tpu.vector_store %arg9[%c0_31, %c8], %52 {strides = array<i32>} : memref<16x32xf32, #tpu.memory_space<vmem>>, vector<16x8xf32>,
    %54 = vector.extract_strided_slice %47 {offsets = [4, 0, 0], sizes = [2, 8, 8], strides = [1, 1, 1]} : vector<8x8x8xf32> to vector<2x8x8xf32>
    %55 = vector.shape_cast %54 : vector<2x8x8xf32> to vector<16x8xf32>
    %c0_32 = arith.constant 0 : index
    %c16_33 = arith.constant 16 : index
    %56 = vector.load %arg9[%c0_32, %c16_33] : memref<16x32xf32, #tpu.memory_space<vmem>>, vector<16x8xf32>
    tpu.vector_store %arg9[%c0_32, %c16_33], %55 {strides = array<i32>} : memref<16x32xf32, #tpu.memory_space<vmem>>, vector<16x8xf32>,
    %57 = vector.extract_strided_slice %47 {offsets = [6, 0, 0], sizes = [2, 8, 8], strides = [1, 1, 1]} : vector<8x8x8xf32> to vector<2x8x8xf32>
    %58 = vector.shape_cast %57 : vector<2x8x8xf32> to vector<16x8xf32>
    %c0_34 = arith.constant 0 : index
    %c24 = arith.constant 24 : index
    %59 = vector.load %arg9[%c0_34, %c24] : memref<16x32xf32, #tpu.memory_space<vmem>>, vector<16x8xf32>
    tpu.vector_store %arg9[%c0_34, %c24], %58 {strides = array<i32>} : memref<16x32xf32, #tpu.memory_space<vmem>>, vector<16x8xf32>,
    %60 = vector.extract_strided_slice %5 {offsets = [0, 96], sizes = [32, 32], strides = [1, 1]} : vector<32x192xf32> to vector<32x32xf32>
    %c0_35 = arith.constant 0 : index
    %c0_36 = arith.constant 0 : index
    %61 = vector.load %arg9[%c0_35, %c0_36] : memref<16x32xf32, #tpu.memory_space<vmem>>, vector<16x32xf32>
    %cst_37 = arith.constant dense<0.000000e+00> : vector<16x32xf32>
    %62 = tpu.matmul %61, %60, %cst_37 {dimension_numbers = #tpu.dot_dimension_numbers<[1], [0], [0], [1], [0, 0, 1, 1], [], []>} : vector<16x32xf32>, vector<32x32xf32>, vector<16x32xf32> -> vector<16x32xf32>
    %63 = vector.extract_strided_slice %4 {offsets = [1, 0], sizes = [1, 32], strides = [1, 1]} : vector<8x96xf32> to vector<1x32xf32>
    %64 = vector.broadcast %63 : vector<1x32xf32> to vector<16x32xf32>
    %65 = arith.addf %62, %64 : vector<16x32xf32>
    %66 = arith.addf %65, %1 : vector<16x32xf32>
    %67 = vector.extract_strided_slice %4 {offsets = [2, 0], sizes = [1, 32], strides = [1, 1]} : vector<8x96xf32> to vector<1x32xf32>
    %68 = vector.extract_strided_slice %4 {offsets = [3, 0], sizes = [1, 32], strides = [1, 1]} : vector<8x96xf32> to vector<1x32xf32>
    %cst_38 = arith.constant dense<0.000000e+00> : vector<16xf32>
    %69 = vector.multi_reduction <add>, %66, %cst_38 [1] : vector<16x32xf32> to vector<16xf32>
    %70 = vector.shape_cast %69 : vector<16xf32> to vector<16x1xf32>
    %cst_39 = arith.constant 3.200000e+01 : f32
    %71 = vector.broadcast %cst_39 : f32 to vector<16x1xf32>
    %72 = arith.divf %70, %71 : vector<16x1xf32>
    %73 = vector.broadcast %72 : vector<16x1xf32> to vector<16x32xf32>
    %74 = arith.subf %66, %73 : vector<16x32xf32>
    %75 = arith.mulf %74, %74 : vector<16x32xf32>
    %cst_40 = arith.constant dense<0.000000e+00> : vector<16xf32>
    %76 = vector.multi_reduction <add>, %75, %cst_40 [1] : vector<16x32xf32> to vector<16xf32>
    %77 = vector.shape_cast %76 : vector<16xf32> to vector<16x1xf32>
    %cst_41 = arith.constant 3.200000e+01 : f32
    %78 = vector.broadcast %cst_41 : f32 to vector<16x1xf32>
    %79 = arith.divf %77, %78 : vector<16x1xf32>
    %80 = vector.broadcast %72 : vector<16x1xf32> to vector<16x32xf32>
    %81 = arith.subf %66, %80 : vector<16x32xf32>
    %cst_42 = arith.constant 9.99999974E-6 : f32
    %82 = vector.broadcast %cst_42 : f32 to vector<16x1xf32>
    %83 = arith.addf %79, %82 : vector<16x1xf32>
    %84 = math.rsqrt %83 : vector<16x1xf32>
    %85 = vector.broadcast %84 : vector<16x1xf32> to vector<16x32xf32>
    %86 = arith.mulf %81, %85 : vector<16x32xf32>
    %87 = vector.broadcast %67 : vector<1x32xf32> to vector<16x32xf32>
    %88 = arith.mulf %86, %87 : vector<16x32xf32>
    %89 = vector.broadcast %68 : vector<1x32xf32> to vector<16x32xf32>
    %90 = arith.addf %88, %89 : vector<16x32xf32>
    %91 = vector.broadcast %3 : vector<16x1xf32> to vector<16x32xf32>
    %92 = arith.mulf %90, %91 : vector<16x32xf32>
    %93 = vector.extract_strided_slice %5 {offsets = [0, 128], sizes = [32, 64], strides = [1, 1]} : vector<32x192xf32> to vector<32x64xf32>
    %cst_43 = arith.constant dense<0.000000e+00> : vector<16x64xf32>
    %94 = tpu.matmul %92, %93, %cst_43 {dimension_numbers = #tpu.dot_dimension_numbers<[1], [0], [0], [1], [0, 0, 1, 1], [], []>} : vector<16x32xf32>, vector<32x64xf32>, vector<16x64xf32> -> vector<16x64xf32>
    %95 = vector.extract_strided_slice %4 {offsets = [4, 0], sizes = [1, 64], strides = [1, 1]} : vector<8x96xf32> to vector<1x64xf32>
    %96 = vector.broadcast %95 : vector<1x64xf32> to vector<16x64xf32>
    %97 = arith.addf %94, %96 : vector<16x64xf32>
    %cst_44 = arith.constant 0.000000e+00 : f32
    %98 = vector.broadcast %cst_44 : f32 to vector<16x64xf32>
    %99 = arith.maximumf %97, %98 : vector<16x64xf32>
    %c0_45 = arith.constant 0 : index
    %c0_46 = arith.constant 0 : index
    %100 = vector.load %arg4[%c0_45, %c0_46] : memref<64x32xf32, #tpu.memory_space<vmem>>, vector<64x32xf32>
    %cst_47 = arith.constant dense<0.000000e+00> : vector<16x32xf32>
    %101 = tpu.matmul %99, %100, %cst_47 {dimension_numbers = #tpu.dot_dimension_numbers<[1], [0], [0], [1], [0, 0, 1, 1], [], []>} : vector<16x64xf32>, vector<64x32xf32>, vector<16x32xf32> -> vector<16x32xf32>
    %102 = vector.extract_strided_slice %4 {offsets = [5, 0], sizes = [1, 32], strides = [1, 1]} : vector<8x96xf32> to vector<1x32xf32>
    %103 = vector.broadcast %102 : vector<1x32xf32> to vector<16x32xf32>
    %104 = arith.addf %101, %103 : vector<16x32xf32>
    %105 = arith.addf %104, %92 : vector<16x32xf32>
    %106 = vector.extract_strided_slice %4 {offsets = [6, 0], sizes = [1, 32], strides = [1, 1]} : vector<8x96xf32> to vector<1x32xf32>
    %107 = vector.extract_strided_slice %4 {offsets = [7, 0], sizes = [1, 32], strides = [1, 1]} : vector<8x96xf32> to vector<1x32xf32>
    %cst_48 = arith.constant dense<0.000000e+00> : vector<16xf32>
    %108 = vector.multi_reduction <add>, %105, %cst_48 [1] : vector<16x32xf32> to vector<16xf32>
    %109 = vector.shape_cast %108 : vector<16xf32> to vector<16x1xf32>
    %cst_49 = arith.constant 3.200000e+01 : f32
    %110 = vector.broadcast %cst_49 : f32 to vector<16x1xf32>
    %111 = arith.divf %109, %110 : vector<16x1xf32>
    %112 = vector.broadcast %111 : vector<16x1xf32> to vector<16x32xf32>
    %113 = arith.subf %105, %112 : vector<16x32xf32>
    %114 = arith.mulf %113, %113 : vector<16x32xf32>
    %cst_50 = arith.constant dense<0.000000e+00> : vector<16xf32>
    %115 = vector.multi_reduction <add>, %114, %cst_50 [1] : vector<16x32xf32> to vector<16xf32>
    %116 = vector.shape_cast %115 : vector<16xf32> to vector<16x1xf32>
    %cst_51 = arith.constant 3.200000e+01 : f32
    %117 = vector.broadcast %cst_51 : f32 to vector<16x1xf32>
    %118 = arith.divf %116, %117 : vector<16x1xf32>
    %119 = vector.broadcast %111 : vector<16x1xf32> to vector<16x32xf32>
    %120 = arith.subf %105, %119 : vector<16x32xf32>
    %cst_52 = arith.constant 9.99999974E-6 : f32
    %121 = vector.broadcast %cst_52 : f32 to vector<16x1xf32>
    %122 = arith.addf %118, %121 : vector<16x1xf32>
    %123 = math.rsqrt %122 : vector<16x1xf32>
    %124 = vector.broadcast %123 : vector<16x1xf32> to vector<16x32xf32>
    %125 = arith.mulf %120, %124 : vector<16x32xf32>
    %126 = vector.broadcast %106 : vector<1x32xf32> to vector<16x32xf32>
    %127 = arith.mulf %125, %126 : vector<16x32xf32>
    %128 = vector.broadcast %107 : vector<1x32xf32> to vector<16x32xf32>
    %129 = arith.addf %127, %128 : vector<16x32xf32>
    %130 = vector.broadcast %3 : vector<16x1xf32> to vector<16x32xf32>
    %131 = arith.mulf %129, %130 : vector<16x32xf32>
    %132 = vector.shape_cast %131 : vector<16x32xf32> to vector<2x8x32xf32>
    %c0_53 = arith.constant 0 : index
    %c0_54 = arith.constant 0 : index
    %c0_55 = arith.constant 0 : index
    %133 = vector.load %arg6[%c0_53, %c0_54, %c0_55] : memref<2x8x32xf32, #tpu.memory_space<vmem>>, vector<2x8x32xf32>
    tpu.vector_store %arg6[%c0_53, %c0_54, %c0_55], %132 {strides = array<i32>} : memref<2x8x32xf32, #tpu.memory_space<vmem>>, vector<2x8x32xf32>,
    return
  }
}

</mosaic_0001>

<llo_original>
// kernel: encoder_layer.1
$region0: #{encoder_layer.1}
  #allocation0 [shape = 'u32[]', space=smem, size = 0x4, offset = 0x4, fixed_abs, tag = 'smem constant byte address 0x4 - core index']
  #allocation1 [shape = 'u32[144,128]{1,0:T(1,128)}', space=vmem, size = 0x12000, scoped, tag = 'internal scratch']
  #allocation2 [shape = 'f32[64,24]{1,0:T(8,128)}', space=vmem, size = 0x8000, scoped, tag = 'scratch operand']
  #allocation3 [shape = 'f32[16,32]{1,0:T(8,128)}', space=vmem, size = 0x2000, scoped, tag = 'scratch operand']
  %s0 = inlined_call_operand.vmem [shape: f32[2,8,32], index: 0, kind: input, shape index: {}]
  %s1 = inlined_call_operand.vmem [shape: f32[2,8,1], index: 1, kind: input, shape index: {}]
  %s2 = inlined_call_operand.vmem [shape: f32[2,8,8], index: 2, kind: input, shape index: {}]
  %s3 = inlined_call_operand.vmem [shape: f32[32,192], index: 3, kind: input, shape index: {}]
  %s4 = inlined_call_operand.vmem [shape: f32[64,32], index: 4, kind: input, shape index: {}]
  %s5 = inlined_call_operand.hbm [shape: f32[8,96], index: 5, kind: input, shape index: {}]
  %s6 = inlined_call_operand.hbm [shape: f32[2,8,32], index: 6, kind: output, shape index: {0}]
  %s7 = inlined_call_operand.hbm [shape: f32[8,8,8], index: 7, kind: output, shape index: {1}]
  %8 = xla_tuple %s6, %s7
  %s9 = sld [smem:[#allocation0]]
  $region46: #{encoder_layer.1} parent=0
    _
  %s11 = ssub.s32 1, %s9
  %s12 = scalar_select 0, %s11, %s9
  $region1: #{encoder_layer.1} parent=0
    #allocation4 [shape = 'u8[4096]{0}', space=vmem, size = 0x1000, scoped, tag = 'input window, operand 5, single buffered']
    #allocation5 [shape = 's32[1]{0}', space=sflag, size = 0x4, scoped, tag = 'scoped memory for encoder_layer.1']
    #allocation6 [shape = 's32[1]{0}', space=sflag, size = 0x4, scoped, tag = 'scoped memory for encoder_layer.1']
    #allocation7 [shape = 'u8[8192]{0}', space=vmem, size = 0x2000, scoped, tag = 'output window, operand 0, single buffered']
    #allocation8 [shape = 'u8[32768]{0}', space=vmem, size = 0x8000, scoped, tag = 'output window, operand 1, single buffered']
    #allocation9 [shape = 's32[1]{0}', space=sflag, size = 0x4, scoped, tag = 'scoped memory for encoder_layer.1']
    %13 = vsyncpa [#allocation5], 0
    %14 = vsyncpa [#allocation6], 0
    %15 = vsyncpa [#allocation9], 0
    // Predicated region
    $region2: #{encoder_layer.1} parent=1 // pred_check
      _
    $region3: #{encoder_layer.1} parent=1 // pred_check_branch
      %17 = sbr.rel (0) target = $region5
    $region4: #{encoder_layer.1} parent=1 // pred_region
      _
    $region5: #{encoder_layer.1} parent=1 // pred_fallthru
      _
    // Predicated region
    $region6: #{encoder_layer.1} parent=1 // pred_check
      _
    $region7: #{encoder_layer.1} parent=1 // pred_check_branch
      %19 = sbr.rel (0) target = $region9
    $region8: #{encoder_layer.1} parent=1 // pred_region
      _
    $region9: #{encoder_layer.1} parent=1 // pred_fallthru
      _
    // Predicated region
    $region10: #{encoder_layer.1} parent=1 // pred_check
      _
    $region11: #{encoder_layer.1} parent=1 // pred_check_branch
      %21 = sbr.rel (0) target = $region13
    $region12: #{encoder_layer.1} parent=1 // pred_region
      _
    $region13: #{encoder_layer.1} parent=1 // pred_fallthru
      _
    // Predicated region
    $region14: #{encoder_layer.1} parent=1 // pred_check
      _
    $region15: #{encoder_layer.1} parent=1 // pred_check_branch
      %23 = sbr.rel (0) target = $region17
    $region16: #{encoder_layer.1} parent=1 // pred_region
      _
    $region17: #{encoder_layer.1} parent=1 // pred_fallthru
      _
    // Predicated region
    $region18: #{encoder_layer.1} parent=1 // pred_check
      _
    $region19: #{encoder_layer.1} parent=1 // pred_check_branch
      %25 = sbr.rel (0) target = $region21
    $region20: #{encoder_layer.1} parent=1 // pred_region
      _
    $region21: #{encoder_layer.1} parent=1 // pred_fallthru
      _
    // Predicated region
    $region22: #{encoder_layer.1} parent=1 // pred_check
      _
    $region23: #{encoder_layer.1} parent=1 // pred_check_branch
      %27 = sbr.rel (0) target = $region25
    $region24: #{encoder_layer.1} parent=1 // pred_region
      %s29 = ssub.s32 128, 128
      %30 = vsyncadd [#allocation5], %s29
      %s32 = sshll.u32 [#allocation4], 4
      %s33 = int_to_ptr.vmem [resolvable:$true] %s32
      %35 = dma.hbm_to_vmem [thread:$0]  %s5, 128, %s33, [#allocation5]
    $region25: #{encoder_layer.1} parent=1 // pred_fallthru
      _
    // Predicated region
    $region26: #{encoder_layer.1} parent=1 // pred_check
      _
    $region27: #{encoder_layer.1} parent=1 // pred_check_branch
      %37 = sbr.rel (0) target = $region29
    $region28: #{encoder_layer.1} parent=1 // pred_region
      %38 = dma.done [#allocation5], 128
    $region29: #{encoder_layer.1} parent=1 // pred_fallthru
      _
    %v39 = vld [vmem:[%s0] sm:$0xff]
    %v40 = vld [vmem:[%s0 + $0x8] sm:$0xff]
    %v41 = vld [vmem:[%s1] sm:$0xff]
    %v42 = vld [vmem:[%s1 + $0x8] sm:$0xff]
    %v43 = vld [vmem:[#allocation4] sm:$0xff]
    %v44 = vld [vmem:[%s3] sm:$0xff]
    %v45 = vld [vmem:[%s3 + $0x8] sm:$0xff]
    %v46 = vld [vmem:[%s3 + $0x10] sm:$0xff]
    %v47 = vld [vmem:[%s3 + $0x18] sm:$0xff]
    %v48 = vld [vmem:[%s3 + $0x20] sm:$0xff]
    %v49 = vld [vmem:[%s3 + $0x28] sm:$0xff]
    %v50 = vld [vmem:[%s3 + $0x30] sm:$0xff]
    %v51 = vld [vmem:[%s3 + $0x38] sm:$0xff]
    %v52 = vlaneseq
    %v53 = vshrl.u32 %v52, 7
    %v54 = vsub.s32 0, %v53
    %v55 = vrot.slane %v43, %v54
    %vm56 = vcmask 261120
    %v58 = vsel %vm56, %v39, 0
    %v61 = vsel %vm56, %v40, 0
    %63 = vmatprep.subr.mxu0 0.0
    %64 = vmatpush1.msra.mxu0 %v44
    %65 = vmatprep.subr.mxu0 0.0
    %66 = vmatpush1.msra.mxu0 %v46
    %67 = vmatprep.subr.mxu0 0.0
    %68 = vmatpush1.msra.mxu0 %v48
    %69 = vmatprep.subr.mxu0 0.0
    %70 = vmatpush1.msra.mxu0 %v50
    %71 = vmatprep.subr.mxu0 0.0
    %72 = vmatpush1.msra.mxu0 0.0
    %73 = vmatprep.subr.mxu0 0.0
    %74 = vmatpush1.msra.mxu0 0.0
    %75 = vmatprep.subr.mxu0 0.0
    %76 = vmatpush1.msra.mxu0 0.0
    %77 = vmatprep.subr.mxu0 0.0
    %78 = vmatpush1.msra.mxu0 0.0
    %79 = vmatprep.subr.mxu0 0.0
    %80 = vmatpush1.msra.mxu0 0.0
    %81 = vmatprep.subr.mxu0 0.0
    %82 = vmatpush1.msra.mxu0 0.0
    %83 = vmatprep.subr.mxu0 0.0
    %84 = vmatpush1.msra.mxu0 0.0
    %85 = vmatprep.subr.mxu0 0.0
    %86 = vmatpush1.msra.mxu0 0.0
    %87 = vmatprep.subr.mxu0 0.0
    %88 = vmatpush1.msra.mxu0 0.0
    %89 = vmatprep.subr.mxu0 0.0
    %90 = vmatpush1.msra.mxu0 0.0
    %91 = vmatprep.subr.mxu0 0.0
    %92 = vmatpush1.msra.mxu0 0.0
    %93 = vmatprep.subr.mxu0 0.0
    %94 = vmatpush1.msra.mxu0 0.0
    %95 = vmatprep.subr.mxu0 0.0
    %96 = vmatpush1.msra.mxu0 0.0
    %97 = vmatprep.subr.mxu0 0.0
    %98 = vmatpush1.msra.mxu0 0.0
    %99 = vmatprep.subr.mxu0 0.0
    %100 = vmatpush1.msra.mxu0 0.0
    %101 = vmatprep.subr.mxu0 0.0
    %102 = vmatpush1.msra.mxu0 0.0
    %103 = vmatprep.subr.mxu0 0.0
    %104 = vmatpush1.msra.mxu0 0.0
    %105 = vmatprep.subr.mxu0 0.0
    %106 = vmatpush1.msra.mxu0 0.0
    %107 = vmatprep.subr.mxu0 0.0
    %108 = vmatpush1.msra.mxu0 0.0
    %109 = vmatprep.subr.mxu0 0.0
    %110 = vmatpush1.msra.mxu0 0.0
    %111 = vmatprep.subr.mxu0 0.0
    %112 = vmatpush1.msra.mxu0 0.0
    %113 = vmatprep.subr.mxu0 0.0
    %114 = vmatpush1.msra.mxu0 0.0
    %115 = vmatprep.subr.mxu0 0.0
    %116 = vmatpush1.msra.mxu0 0.0
    %117 = vmatprep.subr.mxu0 0.0
    %118 = vmatpush1.msra.mxu0 0.0
    %119 = vmatprep.subr.mxu0 0.0
    %120 = vmatpush1.msra.mxu0 0.0
    %121 = vmatprep.subr.mxu0 0.0
    %122 = vmatpush1.msra.mxu0 0.0
    %123 = vmatprep.subr.mxu0 0.0
    %124 = vmatpush1.msra.mxu0 0.0
    %125 = vmatprep.subr.mxu0 0.0
    %126 = vmatpush1.msra.mxu0 0.0
    %127 = vmatprep.mubr.f32.mxu0 0.0
    %128 = vmatmul.mubr.f32.gmra.mrb[0].mxu0 %v58
    %v129 = vpop.f32.mrb[0].mxu0
    %v130 = vadd.f32 %v55, %v129
    %v131 = vpop.f32.mrb[0].mxu0
    %132 = vmatprep.mubr.f32.mxu0 0.0
    %133 = vmatmul.mubr.f32.gmra.mrb[0].mxu0 %v61
    %v134 = vpop.f32.mrb[0].mxu0
    %v135 = vadd.f32 %v55, %v134
    %v136 = vpop.f32.mrb[0].mxu0
    %137 = vdwg.mxu0
    %vm138 = vcmask 195584
    %139 = vst.msk [vmem:[#allocation2] sm:$0xff] %vm138, %v130
    %140 = vst.msk [vmem:[#allocation2 + $0x8] sm:$0xff] %vm138, %v135
    %143 = vrot.lane.b32.xlu0 %v130, 104
    %v144 = vpop.permute.xlu0 %143
    %145 = vrot.lane.b32.xlu0 %v135, 104
    %v146 = vpop.permute.xlu0 %145
    %149 = vst.msk [vmem:[#allocation2 + $0x10] sm:$0xff] %vm138, %v144
    %150 = vst.msk [vmem:[#allocation2 + $0x18] sm:$0xff] %vm138, %v146
    %151 = vrot.lane.b32.xlu0 %v130, 80
    %v152 = vpop.permute.xlu0 %151
    %153 = vrot.lane.b32.xlu0 %v135, 80
    %v154 = vpop.permute.xlu0 %153
    %157 = vst.msk [vmem:[#allocation2 + $0x20] sm:$0xff] %vm138, %v152
    %158 = vst.msk [vmem:[#allocation2 + $0x28] sm:$0xff] %vm138, %v154
    %159 = vrot.lane.b32.xlu0 %v130, 56
    %v160 = vpop.permute.xlu0 %159
    %161 = vrot.lane.b32.xlu0 %v135, 56
    %v162 = vpop.permute.xlu0 %161
    %165 = vst.msk [vmem:[#allocation2 + $0x30] sm:$0xff] %vm138, %v160
    %166 = vst.msk [vmem:[#allocation2 + $0x38] sm:$0xff] %vm138, %v162
    %v167 = vld [vmem:[#allocation2] sm:$0xff]
    %v168 = vld [vmem:[#allocation2 + $0x8] sm:$0xff]
    %v169 = vld [vmem:[#allocation2 + $0x10] sm:$0xff]
    %v170 = vld [vmem:[#allocation2 + $0x18] sm:$0xff]
    %v171 = vld [vmem:[#allocation2 + $0x20] sm:$0xff]
    %v172 = vld [vmem:[#allocation2 + $0x28] sm:$0xff]
    %v173 = vld [vmem:[#allocation2 + $0x30] sm:$0xff]
    %v174 = vld [vmem:[#allocation2 + $0x38] sm:$0xff]
    %v175 = vld [vmem:[%s2] sm:$0xff]
    %v176 = vld [vmem:[%s2 + $0x8] sm:$0xff]
    %vm177 = vcmp.gt.f32.partialorder %v175, 0.0
    %vm178 = vcmp.gt.f32.partialorder %v176, 0.0
    %v179 = vsel %vm177, -1e+30, 0.0
    %v180 = vsel %vm178, -1e+30, 0.0
    %182 = vrot.lane.b32.xlu0 %v167, 120
    %v183 = vpop.permute.xlu0 %182
    %vm184 = vcmask 64512
    %v185 = vsel %vm184, %v167, 0
    %v187 = vsel %vm184, %v183, 0
    %189 = vmatprep.subr.mxu0 0.0
    %190 = vmatpush1.xpose.msra.mxu0 %v187
    %191 = vmatprep.subr.mxu0 0.0
    %192 = vmatpush1.xpose.msra.mxu0 0.0
    %193 = vmatprep.subr.mxu0 0.0
    %194 = vmatpush1.xpose.msra.mxu0 0.0
    %195 = vmatprep.subr.mxu0 0.0
    %196 = vmatpush1.xpose.msra.mxu0 0.0
    %197 = vmatprep.subr.mxu0 0.0
    %198 = vmatpush1.xpose.msra.mxu0 0.0
    %199 = vmatprep.subr.mxu0 0.0
    %200 = vmatpush1.xpose.msra.mxu0 0.0
    %201 = vmatprep.subr.mxu0 0.0
    %202 = vmatpush1.xpose.msra.mxu0 0.0
    %203 = vmatprep.subr.mxu0 0.0
    %204 = vmatpush1.xpose.msra.mxu0 0.0
    %205 = vmatprep.subr.mxu0 0.0
    %206 = vmatpush1.xpose.msra.mxu0 0.0
    %207 = vmatprep.subr.mxu0 0.0
    %208 = vmatpush1.xpose.msra.mxu0 0.0
    %209 = vmatprep.subr.mxu0 0.0
    %210 = vmatpush1.xpose.msra.mxu0 0.0
    %211 = vmatprep.subr.mxu0 0.0
    %212 = vmatpush1.xpose.msra.mxu0 0.0
    %213 = vmatprep.subr.mxu0 0.0
    %214 = vmatpush1.xpose.msra.mxu0 0.0
    %215 = vmatprep.subr.mxu0 0.0
    %216 = vmatpush1.xpose.msra.mxu0 0.0
    %217 = vmatprep.subr.mxu0 0.0
    %218 = vmatpush1.xpose.msra.mxu0 0.0
    %219 = vmatprep.subr.mxu0 0.0
    %220 = vmatpush1.xpose.msra.mxu0 0.0
    %221 = vmatprep.subr.mxu0 0.0
    %222 = vmatpush1.xpose.msra.mxu0 0.0
    %223 = vmatprep.subr.mxu0 0.0
    %224 = vmatpush1.xpose.msra.mxu0 0.0
    %225 = vmatprep.subr.mxu0 0.0
    %226 = vmatpush1.xpose.msra.mxu0 0.0
    %227 = vmatprep.subr.mxu0 0.0
    %228 = vmatpush1.xpose.msra.mxu0 0.0
    %229 = vmatprep.subr.mxu0 0.0
    %230 = vmatpush1.xpose.msra.mxu0 0.0
    %231 = vmatprep.subr.mxu0 0.0
    %232 = vmatpush1.xpose.msra.mxu0 0.0
    %233 = vmatprep.subr.mxu0 0.0
    %234 = vmatpush1.xpose.msra.mxu0 0.0
    %235 = vmatprep.subr.mxu0 0.0
    %236 = vmatpush1.xpose.msra.mxu0 0.0
    %237 = vmatprep.subr.mxu0 0.0
    %238 = vmatpush1.xpose.msra.mxu0 0.0
    %239 = vmatprep.subr.mxu0 0.0
    %240 = vmatpush1.xpose.msra.mxu0 0.0
    %241 = vmatprep.subr.mxu0 0.0
    %242 = vmatpush1.xpose.msra.mxu0 0.0
    %243 = vmatprep.subr.mxu0 0.0
    %244 = vmatpush1.xpose.msra.mxu0 0.0
    %245 = vmatprep.subr.mxu0 0.0
    %246 = vmatpush1.xpose.msra.mxu0 0.0
    %247 = vmatprep.subr.mxu0 0.0
    %248 = vmatpush1.xpose.msra.mxu0 0.0
    %249 = vmatprep.subr.mxu0 0.0
    %250 = vmatpush1.xpose.msra.mxu0 0.0
    %251 = vmatprep.subr.mxu0 0.0
    %252 = vmatpush1.xpose.msra.mxu0 0.0
    %253 = vmatprep.mubr.f32.mxu0 0.0
    %254 = vmatmul.mubr.f32.gmra.mrb[0].mxu0 %v185
    %v255 = vpop.f32.mrb[0].mxu0
    %v256 = vadd.f32 %v179, %v255
    %v257 = vpop.f32.mrb[0].mxu0
    %258 = vdwg.mxu0
    %260 = vrot.lane.b32.xlu0 %v168, 120
    %v261 = vpop.permute.xlu0 %260
    %v262 = vsel %vm184, %v168, 0
    %v264 = vsel %vm184, %v261, 0
    %266 = vmatprep.subr.mxu0 0.0
    %267 = vmatpush1.xpose.msra.mxu0 %v264
    %268 = vmatprep.subr.mxu0 0.0
    %269 = vmatpush1.xpose.msra.mxu0 0.0
    %270 = vmatprep.subr.mxu0 0.0
    %271 = vmatpush1.xpose.msra.mxu0 0.0
    %272 = vmatprep.subr.mxu0 0.0
    %273 = vmatpush1.xpose.msra.mxu0 0.0
    %274 = vmatprep.subr.mxu0 0.0
    %275 = vmatpush1.xpose.msra.mxu0 0.0
    %276 = vmatprep.subr.mxu0 0.0
    %277 = vmatpush1.xpose.msra.mxu0 0.0
    %278 = vmatprep.subr.mxu0 0.0
    %279 = vmatpush1.xpose.msra.mxu0 0.0
    %280 = vmatprep.subr.mxu0 0.0
    %281 = vmatpush1.xpose.msra.mxu0 0.0
    %282 = vmatprep.subr.mxu0 0.0
    %283 = vmatpush1.xpose.msra.mxu0 0.0
    %284 = vmatprep.subr.mxu0 0.0
    %285 = vmatpush1.xpose.msra.mxu0 0.0
    %286 = vmatprep.subr.mxu0 0.0
    %287 = vmatpush1.xpose.msra.mxu0 0.0
    %288 = vmatprep.subr.mxu0 0.0
    %289 = vmatpush1.xpose.msra.mxu0 0.0
    %290 = vmatprep.subr.mxu0 0.0
    %291 = vmatpush1.xpose.msra.mxu0 0.0
    %292 = vmatprep.subr.mxu0 0.0
    %293 = vmatpush1.xpose.msra.mxu0 0.0
    %294 = vmatprep.subr.mxu0 0.0
    %295 = vmatpush1.xpose.msra.mxu0 0.0
    %296 = vmatprep.subr.mxu0 0.0
    %297 = vmatpush1.xpose.msra.mxu0 0.0
    %298 = vmatprep.subr.mxu0 0.0
    %299 = vmatpush1.xpose.msra.mxu0 0.0
    %300 = vmatprep.subr.mxu0 0.0
    %301 = vmatpush1.xpose.msra.mxu0 0.0
    %302 = vmatprep.subr.mxu0 0.0
    %303 = vmatpush1.xpose.msra.mxu0 0.0
    %304 = vmatprep.subr.mxu0 0.0
    %305 = vmatpush1.xpose.msra.mxu0 0.0
    %306 = vmatprep.subr.mxu0 0.0
    %307 = vmatpush1.xpose.msra.mxu0 0.0
    %308 = vmatprep.subr.mxu0 0.0
    %309 = vmatpush1.xpose.msra.mxu0 0.0
    %310 = vmatprep.subr.mxu0 0.0
    %311 = vmatpush1.xpose.msra.mxu0 0.0
    %312 = vmatprep.subr.mxu0 0.0
    %313 = vmatpush1.xpose.msra.mxu0 0.0
    %314 = vmatprep.subr.mxu0 0.0
    %315 = vmatpush1.xpose.msra.mxu0 0.0
    %316 = vmatprep.subr.mxu0 0.0
    %317 = vmatpush1.xpose.msra.mxu0 0.0
    %318 = vmatprep.subr.mxu0 0.0
    %319 = vmatpush1.xpose.msra.mxu0 0.0
    %320 = vmatprep.subr.mxu0 0.0
    %321 = vmatpush1.xpose.msra.mxu0 0.0
    %322 = vmatprep.subr.mxu0 0.0
    %323 = vmatpush1.xpose.msra.mxu0 0.0
    %324 = vmatprep.subr.mxu0 0.0
    %325 = vmatpush1.xpose.msra.mxu0 0.0
    %326 = vmatprep.subr.mxu0 0.0
    %327 = vmatpush1.xpose.msra.mxu0 0.0
    %328 = vmatprep.subr.mxu0 0.0
    %329 = vmatpush1.xpose.msra.mxu0 0.0
    %330 = vmatprep.mubr.f32.mxu0 0.0
    %331 = vmatmul.mubr.f32.gmra.mrb[0].mxu0 %v262
    %v332 = vpop.f32.mrb[0].mxu0
    %v333 = vadd.f32 %v180, %v332
    %v334 = vpop.f32.mrb[0].mxu0
    %335 = vdwg.mxu0
    %337 = vrot.lane.b32.xlu0 %v169, 120
    %v338 = vpop.permute.xlu0 %337
    %v339 = vsel %vm184, %v169, 0
    %v341 = vsel %vm184, %v338, 0
    %343 = vmatprep.subr.mxu0 0.0
    %344 = vmatpush1.xpose.msra.mxu0 %v341
    %345 = vmatprep.subr.mxu0 0.0
    %346 = vmatpush1.xpose.msra.mxu0 0.0
    %347 = vmatprep.subr.mxu0 0.0
    %348 = vmatpush1.xpose.msra.mxu0 0.0
    %349 = vmatprep.subr.mxu0 0.0
    %350 = vmatpush1.xpose.msra.mxu0 0.0
    %351 = vmatprep.subr.mxu0 0.0
    %352 = vmatpush1.xpose.msra.mxu0 0.0
    %353 = vmatprep.subr.mxu0 0.0
    %354 = vmatpush1.xpose.msra.mxu0 0.0
    %355 = vmatprep.subr.mxu0 0.0
    %356 = vmatpush1.xpose.msra.mxu0 0.0
    %357 = vmatprep.subr.mxu0 0.0
    %358 = vmatpush1.xpose.msra.mxu0 0.0
    %359 = vmatprep.subr.mxu0 0.0
    %360 = vmatpush1.xpose.msra.mxu0 0.0
    %361 = vmatprep.subr.mxu0 0.0
    %362 = vmatpush1.xpose.msra.mxu0 0.0
    %363 = vmatprep.subr.mxu0 0.0
    %364 = vmatpush1.xpose.msra.mxu0 0.0
    %365 = vmatprep.subr.mxu0 0.0
    %366 = vmatpush1.xpose.msra.mxu0 0.0
    %367 = vmatprep.subr.mxu0 0.0
    %368 = vmatpush1.xpose.msra.mxu0 0.0
    %369 = vmatprep.subr.mxu0 0.0
    %370 = vmatpush1.xpose.msra.mxu0 0.0
    %371 = vmatprep.subr.mxu0 0.0
    %372 = vmatpush1.xpose.msra.mxu0 0.0
    %373 = vmatprep.subr.mxu0 0.0
    %374 = vmatpush1.xpose.msra.mxu0 0.0
    %375 = vmatprep.subr.mxu0 0.0
    %376 = vmatpush1.xpose.msra.mxu0 0.0
    %377 = vmatprep.subr.mxu0 0.0
    %378 = vmatpush1.xpose.msra.mxu0 0.0
    %379 = vmatprep.subr.mxu0 0.0
    %380 = vmatpush1.xpose.msra.mxu0 0.0
    %381 = vmatprep.subr.mxu0 0.0
    %382 = vmatpush1.xpose.msra.mxu0 0.0
    %383 = vmatprep.subr.mxu0 0.0
    %384 = vmatpush1.xpose.msra.mxu0 0.0
    %385 = vmatprep.subr.mxu0 0.0
    %386 = vmatpush1.xpose.msra.mxu0 0.0
    %387 = vmatprep.subr.mxu0 0.0
    %388 = vmatpush1.xpose.msra.mxu0 0.0
    %389 = vmatprep.subr.mxu0 0.0
    %390 = vmatpush1.xpose.msra.mxu0 0.0
    %391 = vmatprep.subr.mxu0 0.0
    %392 = vmatpush1.xpose.msra.mxu0 0.0
    %393 = vmatprep.subr.mxu0 0.0
    %394 = vmatpush1.xpose.msra.mxu0 0.0
    %395 = vmatprep.subr.mxu0 0.0
    %396 = vmatpush1.xpose.msra.mxu0 0.0
    %397 = vmatprep.subr.mxu0 0.0
    %398 = vmatpush1.xpose.msra.mxu0 0.0
    %399 = vmatprep.subr.mxu0 0.0
    %400 = vmatpush1.xpose.msra.mxu0 0.0
    %401 = vmatprep.subr.mxu0 0.0
    %402 = vmatpush1.xpose.msra.mxu0 0.0
    %403 = vmatprep.subr.mxu0 0.0
    %404 = vmatpush1.xpose.msra.mxu0 0.0
    %405 = vmatprep.subr.mxu0 0.0
    %406 = vmatpush1.xpose.msra.mxu0 0.0
    %407 = vmatprep.mubr.f32.mxu0 0.0
    %408 = vmatmul.mubr.f32.gmra.mrb[0].mxu0 %v339
    %v409 = vpop.f32.mrb[0].mxu0
    %v410 = vadd.f32 %v179, %v409
    %v411 = vpop.f32.mrb[0].mxu0
    %412 = vdwg.mxu0
    %414 = vrot.lane.b32.xlu0 %v170, 120
    %v415 = vpop.permute.xlu0 %414
    %v416 = vsel %vm184, %v170, 0
    %v418 = vsel %vm184, %v415, 0
    %420 = vmatprep.subr.mxu0 0.0
    %421 = vmatpush1.xpose.msra.mxu0 %v418
    %422 = vmatprep.subr.mxu0 0.0
    %423 = vmatpush1.xpose.msra.mxu0 0.0
    %424 = vmatprep.subr.mxu0 0.0
    %425 = vmatpush1.xpose.msra.mxu0 0.0
    %426 = vmatprep.subr.mxu0 0.0
    %427 = vmatpush1.xpose.msra.mxu0 0.0
    %428 = vmatprep.subr.mxu0 0.0
    %429 = vmatpush1.xpose.msra.mxu0 0.0
    %430 = vmatprep.subr.mxu0 0.0
    %431 = vmatpush1.xpose.msra.mxu0 0.0
    %432 = vmatprep.subr.mxu0 0.0
    %433 = vmatpush1.xpose.msra.mxu0 0.0
    %434 = vmatprep.subr.mxu0 0.0
    %435 = vmatpush1.xpose.msra.mxu0 0.0
    %436 = vmatprep.subr.mxu0 0.0
    %437 = vmatpush1.xpose.msra.mxu0 0.0
    %438 = vmatprep.subr.mxu0 0.0
    %439 = vmatpush1.xpose.msra.mxu0 0.0
    %440 = vmatprep.subr.mxu0 0.0
    %441 = vmatpush1.xpose.msra.mxu0 0.0
    %442 = vmatprep.subr.mxu0 0.0
    %443 = vmatpush1.xpose.msra.mxu0 0.0
    %444 = vmatprep.subr.mxu0 0.0
    %445 = vmatpush1.xpose.msra.mxu0 0.0
    %446 = vmatprep.subr.mxu0 0.0
    %447 = vmatpush1.xpose.msra.mxu0 0.0
    %448 = vmatprep.subr.mxu0 0.0
    %449 = vmatpush1.xpose.msra.mxu0 0.0
    %450 = vmatprep.subr.mxu0 0.0
    %451 = vmatpush1.xpose.msra.mxu0 0.0
    %452 = vmatprep.subr.mxu0 0.0
    %453 = vmatpush1.xpose.msra.mxu0 0.0
    %454 = vmatprep.subr.mxu0 0.0
    %455 = vmatpush1.xpose.msra.mxu0 0.0
    %456 = vmatprep.subr.mxu0 0.0
    %457 = vmatpush1.xpose.msra.mxu0 0.0
    %458 = vmatprep.subr.mxu0 0.0
    %459 = vmatpush1.xpose.msra.mxu0 0.0
    %460 = vmatprep.subr.mxu0 0.0
    %461 = vmatpush1.xpose.msra.mxu0 0.0
    %462 = vmatprep.subr.mxu0 0.0
    %463 = vmatpush1.xpose.msra.mxu0 0.0
    %464 = vmatprep.subr.mxu0 0.0
    %465 = vmatpush1.xpose.msra.mxu0 0.0
    %466 = vmatprep.subr.mxu0 0.0
    %467 = vmatpush1.xpose.msra.mxu0 0.0
    %468 = vmatprep.subr.mxu0 0.0
    %469 = vmatpush1.xpose.msra.mxu0 0.0
    %470 = vmatprep.subr.mxu0 0.0
    %471 = vmatpush1.xpose.msra.mxu0 0.0
    %472 = vmatprep.subr.mxu0 0.0
    %473 = vmatpush1.xpose.msra.mxu0 0.0
    %474 = vmatprep.subr.mxu0 0.0
    %475 = vmatpush1.xpose.msra.mxu0 0.0
    %476 = vmatprep.subr.mxu0 0.0
    %477 = vmatpush1.xpose.msra.mxu0 0.0
    %478 = vmatprep.subr.mxu0 0.0
    %479 = vmatpush1.xpose.msra.mxu0 0.0
    %480 = vmatprep.subr.mxu0 0.0
    %481 = vmatpush1.xpose.msra.mxu0 0.0
    %482 = vmatprep.subr.mxu0 0.0
    %483 = vmatpush1.xpose.msra.mxu0 0.0
    %484 = vmatprep.mubr.f32.mxu0 0.0
    %485 = vmatmul.mubr.f32.gmra.mrb[0].mxu0 %v416
    %v486 = vpop.f32.mrb[0].mxu0
    %v487 = vadd.f32 %v180, %v486
    %v488 = vpop.f32.mrb[0].mxu0
    %489 = vdwg.mxu0
    %491 = vrot.lane.b32.xlu0 %v171, 120
    %v492 = vpop.permute.xlu0 %491
    %v493 = vsel %vm184, %v171, 0
    %v495 = vsel %vm184, %v492, 0
    %497 = vmatprep.subr.mxu0 0.0
    %498 = vmatpush1.xpose.msra.mxu0 %v495
    %499 = vmatprep.subr.mxu0 0.0
    %500 = vmatpush1.xpose.msra.mxu0 0.0
    %501 = vmatprep.subr.mxu0 0.0
    %502 = vmatpush1.xpose.msra.mxu0 0.0
    %503 = vmatprep.subr.mxu0 0.0
    %504 = vmatpush1.xpose.msra.mxu0 0.0
    %505 = vmatprep.subr.mxu0 0.0
    %506 = vmatpush1.xpose.msra.mxu0 0.0
    %507 = vmatprep.subr.mxu0 0.0
    %508 = vmatpush1.xpose.msra.mxu0 0.0
    %509 = vmatprep.subr.mxu0 0.0
    %510 = vmatpush1.xpose.msra.mxu0 0.0
    %511 = vmatprep.subr.mxu0 0.0
    %512 = vmatpush1.xpose.msra.mxu0 0.0
    %513 = vmatprep.subr.mxu0 0.0
    %514 = vmatpush1.xpose.msra.mxu0 0.0
    %515 = vmatprep.subr.mxu0 0.0
    %516 = vmatpush1.xpose.msra.mxu0 0.0
    %517 = vmatprep.subr.mxu0 0.0
    %518 = vmatpush1.xpose.msra.mxu0 0.0
    %519 = vmatprep.subr.mxu0 0.0
    %520 = vmatpush1.xpose.msra.mxu0 0.0
    %521 = vmatprep.subr.mxu0 0.0
    %522 = vmatpush1.xpose.msra.mxu0 0.0
    %523 = vmatprep.subr.mxu0 0.0
    %524 = vmatpush1.xpose.msra.mxu0 0.0
    %525 = vmatprep.subr.mxu0 0.0
    %526 = vmatpush1.xpose.msra.mxu0 0.0
    %527 = vmatprep.subr.mxu0 0.0
    %528 = vmatpush1.xpose.msra.mxu0 0.0
    %529 = vmatprep.subr.mxu0 0.0
    %530 = vmatpush1.xpose.msra.mxu0 0.0
    %531 = vmatprep.subr.mxu0 0.0
    %532 = vmatpush1.xpose.msra.mxu0 0.0
    %533 = vmatprep.subr.mxu0 0.0
    %534 = vmatpush1.xpose.msra.mxu0 0.0
    %535 = vmatprep.subr.mxu0 0.0
    %536 = vmatpush1.xpose.msra.mxu0 0.0
    %537 = vmatprep.subr.mxu0 0.0
    %538 = vmatpush1.xpose.msra.mxu0 0.0
    %539 = vmatprep.subr.mxu0 0.0
    %540 = vmatpush1.xpose.msra.mxu0 0.0
    %541 = vmatprep.subr.mxu0 0.0
    %542 = vmatpush1.xpose.msra.mxu0 0.0
    %543 = vmatprep.subr.mxu0 0.0
    %544 = vmatpush1.xpose.msra.mxu0 0.0
    %545 = vmatprep.subr.mxu0 0.0
    %546 = vmatpush1.xpose.msra.mxu0 0.0
    %547 = vmatprep.subr.mxu0 0.0
    %548 = vmatpush1.xpose.msra.mxu0 0.0
    %549 = vmatprep.subr.mxu0 0.0
    %550 = vmatpush1.xpose.msra.mxu0 0.0
    %551 = vmatprep.subr.mxu0 0.0
    %552 = vmatpush1.xpose.msra.mxu0 0.0
    %553 = vmatprep.subr.mxu0 0.0
    %554 = vmatpush1.xpose.msra.mxu0 0.0
    %555 = vmatprep.subr.mxu0 0.0
    %556 = vmatpush1.xpose.msra.mxu0 0.0
    %557 = vmatprep.subr.mxu0 0.0
    %558 = vmatpush1.xpose.msra.mxu0 0.0
    %559 = vmatprep.subr.mxu0 0.0
    %560 = vmatpush1.xpose.msra.mxu0 0.0
    %561 = vmatprep.mubr.f32.mxu0 0.0
    %562 = vmatmul.mubr.f32.gmra.mrb[0].mxu0 %v493
    %v563 = vpop.f32.mrb[0].mxu0
    %v564 = vadd.f32 %v179, %v563
    %v565 = vpop.f32.mrb[0].mxu0
    %566 = vdwg.mxu0
    %568 = vrot.lane.b32.xlu0 %v172, 120
    %v569 = vpop.permute.xlu0 %568
    %v570 = vsel %vm184, %v172, 0
    %v572 = vsel %vm184, %v569, 0
    %574 = vmatprep.subr.mxu0 0.0
    %575 = vmatpush1.xpose.msra.mxu0 %v572
    %576 = vmatprep.subr.mxu0 0.0
    %577 = vmatpush1.xpose.msra.mxu0 0.0
    %578 = vmatprep.subr.mxu0 0.0
    %579 = vmatpush1.xpose.msra.mxu0 0.0
    %580 = vmatprep.subr.mxu0 0.0
    %581 = vmatpush1.xpose.msra.mxu0 0.0
    %582 = vmatprep.subr.mxu0 0.0
    %583 = vmatpush1.xpose.msra.mxu0 0.0
    %584 = vmatprep.subr.mxu0 0.0
    %585 = vmatpush1.xpose.msra.mxu0 0.0
    %586 = vmatprep.subr.mxu0 0.0
    %587 = vmatpush1.xpose.msra.mxu0 0.0
    %588 = vmatprep.subr.mxu0 0.0
    %589 = vmatpush1.xpose.msra.mxu0 0.0
    %590 = vmatprep.subr.mxu0 0.0
    %591 = vmatpush1.xpose.msra.mxu0 0.0
    %592 = vmatprep.subr.mxu0 0.0
    %593 = vmatpush1.xpose.msra.mxu0 0.0
    %594 = vmatprep.subr.mxu0 0.0
    %595 = vmatpush1.xpose.msra.mxu0 0.0
    %596 = vmatprep.subr.mxu0 0.0
    %597 = vmatpush1.xpose.msra.mxu0 0.0
    %598 = vmatprep.subr.mxu0 0.0
    %599 = vmatpush1.xpose.msra.mxu0 0.0
    %600 = vmatprep.subr.mxu0 0.0
    %601 = vmatpush1.xpose.msra.mxu0 0.0
    %602 = vmatprep.subr.mxu0 0.0
    %603 = vmatpush1.xpose.msra.mxu0 0.0
    %604 = vmatprep.subr.mxu0 0.0
    %605 = vmatpush1.xpose.msra.mxu0 0.0
    %606 = vmatprep.subr.mxu0 0.0
    %607 = vmatpush1.xpose.msra.mxu0 0.0
    %608 = vmatprep.subr.mxu0 0.0
    %609 = vmatpush1.xpose.msra.mxu0 0.0
    %610 = vmatprep.subr.mxu0 0.0
    %611 = vmatpush1.xpose.msra.mxu0 0.0
    %612 = vmatprep.subr.mxu0 0.0
    %613 = vmatpush1.xpose.msra.mxu0 0.0
    %614 = vmatprep.subr.mxu0 0.0
    %615 = vmatpush1.xpose.msra.mxu0 0.0
    %616 = vmatprep.subr.mxu0 0.0
    %617 = vmatpush1.xpose.msra.mxu0 0.0
    %618 = vmatprep.subr.mxu0 0.0
    %619 = vmatpush1.xpose.msra.mxu0 0.0
    %620 = vmatprep.subr.mxu0 0.0
    %621 = vmatpush1.xpose.msra.mxu0 0.0
    %622 = vmatprep.subr.mxu0 0.0
    %623 = vmatpush1.xpose.msra.mxu0 0.0
    %624 = vmatprep.subr.mxu0 0.0
    %625 = vmatpush1.xpose.msra.mxu0 0.0
    %626 = vmatprep.subr.mxu0 0.0
    %627 = vmatpush1.xpose.msra.mxu0 0.0
    %628 = vmatprep.subr.mxu0 0.0
    %629 = vmatpush1.xpose.msra.mxu0 0.0
    %630 = vmatprep.subr.mxu0 0.0
    %631 = vmatpush1.xpose.msra.mxu0 0.0
    %632 = vmatprep.subr.mxu0 0.0
    %633 = vmatpush1.xpose.msra.mxu0 0.0
    %634 = vmatprep.subr.mxu0 0.0
    %635 = vmatpush1.xpose.msra.mxu0 0.0
    %636 = vmatprep.subr.mxu0 0.0
    %637 = vmatpush1.xpose.msra.mxu0 0.0
    %638 = vmatprep.mubr.f32.mxu0 0.0
    %639 = vmatmul.mubr.f32.gmra.mrb[0].mxu0 %v570
    %v640 = vpop.f32.mrb[0].mxu0
    %v641 = vadd.f32 %v180, %v640
    %v642 = vpop.f32.mrb[0].mxu0
    %643 = vdwg.mxu0
    %645 = vrot.lane.b32.xlu0 %v173, 120
    %v646 = vpop.permute.xlu0 %645
    %v647 = vsel %vm184, %v173, 0
    %v649 = vsel %vm184, %v646, 0
    %651 = vmatprep.subr.mxu0 0.0
    %652 = vmatpush1.xpose.msra.mxu0 %v649
    %653 = vmatprep.subr.mxu0 0.0
    %654 = vmatpush1.xpose.msra.mxu0 0.0
    %655 = vmatprep.subr.mxu0 0.0
    %656 = vmatpush1.xpose.msra.mxu0 0.0
    %657 = vmatprep.subr.mxu0 0.0
    %658 = vmatpush1.xpose.msra.mxu0 0.0
    %659 = vmatprep.subr.mxu0 0.0
    %660 = vmatpush1.xpose.msra.mxu0 0.0
    %661 = vmatprep.subr.mxu0 0.0
    %662 = vmatpush1.xpose.msra.mxu0 0.0
    %663 = vmatprep.subr.mxu0 0.0
    %664 = vmatpush1.xpose.msra.mxu0 0.0
    %665 = vmatprep.subr.mxu0 0.0
    %666 = vmatpush1.xpose.msra.mxu0 0.0
    %667 = vmatprep.subr.mxu0 0.0
    %668 = vmatpush1.xpose.msra.mxu0 0.0
    %669 = vmatprep.subr.mxu0 0.0
    %670 = vmatpush1.xpose.msra.mxu0 0.0
    %671 = vmatprep.subr.mxu0 0.0
    %672 = vmatpush1.xpose.msra.mxu0 0.0
    %673 = vmatprep.subr.mxu0 0.0
    %674 = vmatpush1.xpose.msra.mxu0 0.0
    %675 = vmatprep.subr.mxu0 0.0
    %676 = vmatpush1.xpose.msra.mxu0 0.0
    %677 = vmatprep.subr.mxu0 0.0
    %678 = vmatpush1.xpose.msra.mxu0 0.0
    %679 = vmatprep.subr.mxu0 0.0
    %680 = vmatpush1.xpose.msra.mxu0 0.0
    %681 = vmatprep.subr.mxu0 0.0
    %682 = vmatpush1.xpose.msra.mxu0 0.0
    %683 = vmatprep.subr.mxu0 0.0
    %684 = vmatpush1.xpose.msra.mxu0 0.0
    %685 = vmatprep.subr.mxu0 0.0
    %686 = vmatpush1.xpose.msra.mxu0 0.0
    %687 = vmatprep.subr.mxu0 0.0
    %688 = vmatpush1.xpose.msra.mxu0 0.0
    %689 = vmatprep.subr.mxu0 0.0
    %690 = vmatpush1.xpose.msra.mxu0 0.0
    %691 = vmatprep.subr.mxu0 0.0
    %692 = vmatpush1.xpose.msra.mxu0 0.0
    %693 = vmatprep.subr.mxu0 0.0
    %694 = vmatpush1.xpose.msra.mxu0 0.0
    %695 = vmatprep.subr.mxu0 0.0
    %696 = vmatpush1.xpose.msra.mxu0 0.0
    %697 = vmatprep.subr.mxu0 0.0
    %698 = vmatpush1.xpose.msra.mxu0 0.0
    %699 = vmatprep.subr.mxu0 0.0
    %700 = vmatpush1.xpose.msra.mxu0 0.0
    %701 = vmatprep.subr.mxu0 0.0
    %702 = vmatpush1.xpose.msra.mxu0 0.0
    %703 = vmatprep.subr.mxu0 0.0
    %704 = vmatpush1.xpose.msra.mxu0 0.0
    %705 = vmatprep.subr.mxu0 0.0
    %706 = vmatpush1.xpose.msra.mxu0 0.0
    %707 = vmatprep.subr.mxu0 0.0
    %708 = vmatpush1.xpose.msra.mxu0 0.0
    %709 = vmatprep.subr.mxu0 0.0
    %710 = vmatpush1.xpose.msra.mxu0 0.0
    %711 = vmatprep.subr.mxu0 0.0
    %712 = vmatpush1.xpose.msra.mxu0 0.0
    %713 = vmatprep.subr.mxu0 0.0
    %714 = vmatpush1.xpose.msra.mxu0 0.0
    %715 = vmatprep.mubr.f32.mxu0 0.0
    %716 = vmatmul.mubr.f32.gmra.mrb[0].mxu0 %v647
    %v717 = vpop.f32.mrb[0].mxu0
    %v718 = vadd.f32 %v179, %v717
    %v719 = vpop.f32.mrb[0].mxu0
    %720 = vdwg.mxu0
    %722 = vrot.lane.b32.xlu0 %v174, 120
    %v723 = vpop.permute.xlu0 %722
    %v724 = vsel %vm184, %v174, 0
    %v726 = vsel %vm184, %v723, 0
    %728 = vmatprep.subr.mxu0 0.0
    %729 = vmatpush1.xpose.msra.mxu0 %v726
    %730 = vmatprep.subr.mxu0 0.0
    %731 = vmatpush1.xpose.msra.mxu0 0.0
    %732 = vmatprep.subr.mxu0 0.0
    %733 = vmatpush1.xpose.msra.mxu0 0.0
    %734 = vmatprep.subr.mxu0 0.0
    %735 = vmatpush1.xpose.msra.mxu0 0.0
    %736 = vmatprep.subr.mxu0 0.0
    %737 = vmatpush1.xpose.msra.mxu0 0.0
    %738 = vmatprep.subr.mxu0 0.0
    %739 = vmatpush1.xpose.msra.mxu0 0.0
    %740 = vmatprep.subr.mxu0 0.0
    %741 = vmatpush1.xpose.msra.mxu0 0.0
    %742 = vmatprep.subr.mxu0 0.0
    %743 = vmatpush1.xpose.msra.mxu0 0.0
    %744 = vmatprep.subr.mxu0 0.0
    %745 = vmatpush1.xpose.msra.mxu0 0.0
    %746 = vmatprep.subr.mxu0 0.0
    %747 = vmatpush1.xpose.msra.mxu0 0.0
    %748 = vmatprep.subr.mxu0 0.0
    %749 = vmatpush1.xpose.msra.mxu0 0.0
    %750 = vmatprep.subr.mxu0 0.0
    %751 = vmatpush1.xpose.msra.mxu0 0.0
    %752 = vmatprep.subr.mxu0 0.0
    %753 = vmatpush1.xpose.msra.mxu0 0.0
    %754 = vmatprep.subr.mxu0 0.0
    %755 = vmatpush1.xpose.msra.mxu0 0.0
    %756 = vmatprep.subr.mxu0 0.0
    %757 = vmatpush1.xpose.msra.mxu0 0.0
    %758 = vmatprep.subr.mxu0 0.0
    %759 = vmatpush1.xpose.msra.mxu0 0.0
    %760 = vmatprep.subr.mxu0 0.0
    %761 = vmatpush1.xpose.msra.mxu0 0.0
    %762 = vmatprep.subr.mxu0 0.0
    %763 = vmatpush1.xpose.msra.mxu0 0.0
    %764 = vmatprep.subr.mxu0 0.0
    %765 = vmatpush1.xpose.msra.mxu0 0.0
    %766 = vmatprep.subr.mxu0 0.0
    %767 = vmatpush1.xpose.msra.mxu0 0.0
    %768 = vmatprep.subr.mxu0 0.0
    %769 = vmatpush1.xpose.msra.mxu0 0.0
    %770 = vmatprep.subr.mxu0 0.0
    %771 = vmatpush1.xpose.msra.mxu0 0.0
    %772 = vmatprep.subr.mxu0 0.0
    %773 = vmatpush1.xpose.msra.mxu0 0.0
    %774 = vmatprep.subr.mxu0 0.0
    %775 = vmatpush1.xpose.msra.mxu0 0.0
    %776 = vmatprep.subr.mxu0 0.0
    %777 = vmatpush1.xpose.msra.mxu0 0.0
    %778 = vmatprep.subr.mxu0 0.0
    %779 = vmatpush1.xpose.msra.mxu0 0.0
    %780 = vmatprep.subr.mxu0 0.0
    %781 = vmatpush1.xpose.msra.mxu0 0.0
    %782 = vmatprep.subr.mxu0 0.0
    %783 = vmatpush1.xpose.msra.mxu0 0.0
    %784 = vmatprep.subr.mxu0 0.0
    %785 = vmatpush1.xpose.msra.mxu0 0.0
    %786 = vmatprep.subr.mxu0 0.0
    %787 = vmatpush1.xpose.msra.mxu0 0.0
    %788 = vmatprep.subr.mxu0 0.0
    %789 = vmatpush1.xpose.msra.mxu0 0.0
    %790 = vmatprep.subr.mxu0 0.0
    %791 = vmatpush1.xpose.msra.mxu0 0.0
    %792 = vmatprep.mubr.f32.mxu0 0.0
    %793 = vmatmul.mubr.f32.gmra.mrb[0].mxu0 %v724
    %v794 = vpop.f32.mrb[0].mxu0
    %v795 = vadd.f32 %v180, %v794
    %v796 = vpop.f32.mrb[0].mxu0
    %797 = vdwg.mxu0
    %v798 = vsel %vm184, %v256, -inf
    %799 = vmax.xlane.f32.xlu0 %v798
    %v800 = vpop.xlane.xlu0 %799
    %v801 = vsel %vm184, %v333, -inf
    %802 = vmax.xlane.f32.xlu0 %v801
    %v803 = vpop.xlane.xlu0 %802
    %v804 = vsel %vm184, %v410, -inf
    %805 = vmax.xlane.f32.xlu0 %v804
    %v806 = vpop.xlane.xlu0 %805
    %v807 = vsel %vm184, %v487, -inf
    %808 = vmax.xlane.f32.xlu0 %v807
    %v809 = vpop.xlane.xlu0 %808
    %v810 = vsel %vm184, %v564, -inf
    %811 = vmax.xlane.f32.xlu0 %v810
    %v812 = vpop.xlane.xlu0 %811
    %v813 = vsel %vm184, %v641, -inf
    %814 = vmax.xlane.f32.xlu0 %v813
    %v815 = vpop.xlane.xlu0 %814
    %v816 = vsel %vm184, %v718, -inf
    %817 = vmax.xlane.f32.xlu0 %v816
    %v818 = vpop.xlane.xlu0 %817
    %v819 = vsel %vm184, %v795, -inf
    %820 = vmax.xlane.f32.xlu0 %v819
    %v821 = vpop.xlane.xlu0 %820
    %v822 = vsub.f32 %v256, %v800
    %v823 = vsub.f32 %v333, %v803
    %v824 = vsub.f32 %v410, %v806
    %v825 = vsub.f32 %v487, %v809
    %v826 = vsub.f32 %v564, %v812
    %v827 = vsub.f32 %v641, %v815
    %v828 = vsub.f32 %v718, %v818
    %v829 = vsub.f32 %v795, %v821
    %v830 = vmul.f32 %v822, 1.442695
    %v831 = vpow.pop %v830
    %v832 = vmul.f32 %v823, 1.442695
    %v833 = vpow.pop %v832
    %v834 = vmul.f32 %v824, 1.442695
    %v835 = vpow.pop %v834
    %v836 = vmul.f32 %v825, 1.442695
    %v837 = vpow.pop %v836
    %v838 = vmul.f32 %v826, 1.442695
    %v839 = vpow.pop %v838
    %v840 = vmul.f32 %v827, 1.442695
    %v841 = vpow.pop %v840
    %v842 = vmul.f32 %v828, 1.442695
    %v843 = vpow.pop %v842
    %v844 = vmul.f32 %v829, 1.442695
    %v845 = vpow.pop %v844
    %v846 = vsel %vm184, %v831, 0.0
    %847 = vadd.xlane.f32.xlu0 %v846
    %v848 = vpop.xlane.xlu0 %847
    %v849 = vsel %vm184, %v833, 0.0
    %850 = vadd.xlane.f32.xlu0 %v849
    %v851 = vpop.xlane.xlu0 %850
    %v852 = vsel %vm184, %v835, 0.0
    %853 = vadd.xlane.f32.xlu0 %v852
    %v854 = vpop.xlane.xlu0 %853
    %v855 = vsel %vm184, %v837, 0.0
    %856 = vadd.xlane.f32.xlu0 %v855
    %v857 = vpop.xlane.xlu0 %856
    %v858 = vsel %vm184, %v839, 0.0
    %859 = vadd.xlane.f32.xlu0 %v858
    %v860 = vpop.xlane.xlu0 %859
    %v861 = vsel %vm184, %v841, 0.0
    %862 = vadd.xlane.f32.xlu0 %v861
    %v863 = vpop.xlane.xlu0 %862
    %v864 = vsel %vm184, %v843, 0.0
    %865 = vadd.xlane.f32.xlu0 %v864
    %v866 = vpop.xlane.xlu0 %865
    %v867 = vsel %vm184, %v845, 0.0
    %868 = vadd.xlane.f32.xlu0 %v867
    %v869 = vpop.xlane.xlu0 %868
    %v870 = vrcp.pop %v848
    %v871 = vmul.f32 %v831, %v870
    %v872 = vrcp.pop %v851
    %v873 = vmul.f32 %v833, %v872
    %v874 = vrcp.pop %v854
    %v875 = vmul.f32 %v835, %v874
    %v876 = vrcp.pop %v857
    %v877 = vmul.f32 %v837, %v876
    %v878 = vrcp.pop %v860
    %v879 = vmul.f32 %v839, %v878
    %v880 = vrcp.pop %v863
    %v881 = vmul.f32 %v841, %v880
    %v882 = vrcp.pop %v866
    %v883 = vmul.f32 %v843, %v882
    %v884 = vrcp.pop %v869
    %v885 = vmul.f32 %v845, %v884
    %886 = vst.msk [vmem:[#allocation8] sm:$0xff] %vm184, %v871
    %887 = vst.msk [vmem:[#allocation8 + $0x8] sm:$0xff] %vm184, %v873
    %888 = vst.msk [vmem:[#allocation8 + $0x10] sm:$0xff] %vm184, %v875
    %889 = vst.msk [vmem:[#allocation8 + $0x18] sm:$0xff] %vm184, %v877
    %890 = vst.msk [vmem:[#allocation8 + $0x20] sm:$0xff] %vm184, %v879
    %891 = vst.msk [vmem:[#allocation8 + $0x28] sm:$0xff] %vm184, %v881
    %892 = vst.msk [vmem:[#allocation8 + $0x30] sm:$0xff] %vm184, %v883
    %893 = vst.msk [vmem:[#allocation8 + $0x38] sm:$0xff] %vm184, %v885
    %894 = vrot.lane.b32.xlu0 %v167, 112
    %v895 = vpop.permute.xlu0 %894
    %v898 = vsel %vm184, %v871, 0
    %900 = vmatprep.subr.mxu0 0.0
    %901 = vmatpush1.msra.mxu0 %v895
    %902 = vmatprep.subr.mxu0 0.0
    %903 = vmatpush1.msra.mxu0 0.0
    %904 = vmatprep.subr.mxu0 0.0
    %905 = vmatpush1.msra.mxu0 0.0
    %906 = vmatprep.subr.mxu0 0.0
    %907 = vmatpush1.msra.mxu0 0.0
    %908 = vmatprep.subr.mxu0 0.0
    %909 = vmatpush1.msra.mxu0 0.0
    %910 = vmatprep.subr.mxu0 0.0
    %911 = vmatpush1.msra.mxu0 0.0
    %912 = vmatprep.subr.mxu0 0.0
    %913 = vmatpush1.msra.mxu0 0.0
    %914 = vmatprep.subr.mxu0 0.0
    %915 = vmatpush1.msra.mxu0 0.0
    %916 = vmatprep.subr.mxu0 0.0
    %917 = vmatpush1.msra.mxu0 0.0
    %918 = vmatprep.subr.mxu0 0.0
    %919 = vmatpush1.msra.mxu0 0.0
    %920 = vmatprep.subr.mxu0 0.0
    %921 = vmatpush1.msra.mxu0 0.0
    %922 = vmatprep.subr.mxu0 0.0
    %923 = vmatpush1.msra.mxu0 0.0
    %924 = vmatprep.subr.mxu0 0.0
    %925 = vmatpush1.msra.mxu0 0.0
    %926 = vmatprep.subr.mxu0 0.0
    %927 = vmatpush1.msra.mxu0 0.0
    %928 = vmatprep.subr.mxu0 0.0
    %929 = vmatpush1.msra.mxu0 0.0
    %930 = vmatprep.subr.mxu0 0.0
    %931 = vmatpush1.msra.mxu0 0.0
    %932 = vmatprep.subr.mxu0 0.0
    %933 = vmatpush1.msra.mxu0 0.0
    %934 = vmatprep.subr.mxu0 0.0
    %935 = vmatpush1.msra.mxu0 0.0
    %936 = vmatprep.subr.mxu0 0.0
    %937 = vmatpush1.msra.mxu0 0.0
    %938 = vmatprep.subr.mxu0 0.0
    %939 = vmatpush1.msra.mxu0 0.0
    %940 = vmatprep.subr.mxu0 0.0
    %941 = vmatpush1.msra.mxu0 0.0
    %942 = vmatprep.subr.mxu0 0.0
    %943 = vmatpush1.msra.mxu0 0.0
    %944 = vmatprep.subr.mxu0 0.0
    %945 = vmatpush1.msra.mxu0 0.0
    %946 = vmatprep.subr.mxu0 0.0
    %947 = vmatpush1.msra.mxu0 0.0
    %948 = vmatprep.subr.mxu0 0.0
    %949 = vmatpush1.msra.mxu0 0.0
    %950 = vmatprep.subr.mxu0 0.0
    %951 = vmatpush1.msra.mxu0 0.0
    %952 = vmatprep.subr.mxu0 0.0
    %953 = vmatpush1.msra.mxu0 0.0
    %954 = vmatprep.subr.mxu0 0.0
    %955 = vmatpush1.msra.mxu0 0.0
    %956 = vmatprep.subr.mxu0 0.0
    %957 = vmatpush1.msra.mxu0 0.0
    %958 = vmatprep.subr.mxu0 0.0
    %959 = vmatpush1.msra.mxu0 0.0
    %960 = vmatprep.subr.mxu0 0.0
    %961 = vmatpush1.msra.mxu0 0.0
    %962 = vmatprep.subr.mxu0 0.0
    %963 = vmatpush1.msra.mxu0 0.0
    %964 = vmatprep.mubr.f32.mxu0 0.0
    %965 = vmatmul.mubr.f32.gmra.mrb[0].mxu0 %v898
    %v966 = vpop.f32.mrb[0].mxu0
    %v967 = vadd.f32 0.0, %v966
    %v968 = vpop.f32.mrb[0].mxu0
    %969 = vdwg.mxu0
    %970 = vrot.lane.b32.xlu0 %v168, 112
    %v971 = vpop.permute.xlu0 %970
    %v974 = vsel %vm184, %v873, 0
    %976 = vmatprep.subr.mxu0 0.0
    %977 = vmatpush1.msra.mxu0 %v971
    %978 = vmatprep.subr.mxu0 0.0
    %979 = vmatpush1.msra.mxu0 0.0
    %980 = vmatprep.subr.mxu0 0.0
    %981 = vmatpush1.msra.mxu0 0.0
    %982 = vmatprep.subr.mxu0 0.0
    %983 = vmatpush1.msra.mxu0 0.0
    %984 = vmatprep.subr.mxu0 0.0
    %985 = vmatpush1.msra.mxu0 0.0
    %986 = vmatprep.subr.mxu0 0.0
    %987 = vmatpush1.msra.mxu0 0.0
    %988 = vmatprep.subr.mxu0 0.0
    %989 = vmatpush1.msra.mxu0 0.0
    %990 = vmatprep.subr.mxu0 0.0
    %991 = vmatpush1.msra.mxu0 0.0
    %992 = vmatprep.subr.mxu0 0.0
    %993 = vmatpush1.msra.mxu0 0.0
    %994 = vmatprep.subr.mxu0 0.0
    %995 = vmatpush1.msra.mxu0 0.0
    %996 = vmatprep.subr.mxu0 0.0
    %997 = vmatpush1.msra.mxu0 0.0
    %998 = vmatprep.subr.mxu0 0.0
    %999 = vmatpush1.msra.mxu0 0.0
    %1000 = vmatprep.subr.mxu0 0.0
    %1001 = vmatpush1.msra.mxu0 0.0
    %1002 = vmatprep.subr.mxu0 0.0
    %1003 = vmatpush1.msra.mxu0 0.0
    %1004 = vmatprep.subr.mxu0 0.0
    %1005 = vmatpush1.msra.mxu0 0.0
    %1006 = vmatprep.subr.mxu0 0.0
    %1007 = vmatpush1.msra.mxu0 0.0
    %1008 = vmatprep.subr.mxu0 0.0
    %1009 = vmatpush1.msra.mxu0 0.0
    %1010 = vmatprep.subr.mxu0 0.0
    %1011 = vmatpush1.msra.mxu0 0.0
    %1012 = vmatprep.subr.mxu0 0.0
    %1013 = vmatpush1.msra.mxu0 0.0
    %1014 = vmatprep.subr.mxu0 0.0
    %1015 = vmatpush1.msra.mxu0 0.0
    %1016 = vmatprep.subr.mxu0 0.0
    %1017 = vmatpush1.msra.mxu0 0.0
    %1018 = vmatprep.subr.mxu0 0.0
    %1019 = vmatpush1.msra.mxu0 0.0
    %1020 = vmatprep.subr.mxu0 0.0
    %1021 = vmatpush1.msra.mxu0 0.0
    %1022 = vmatprep.subr.mxu0 0.0
    %1023 = vmatpush1.msra.mxu0 0.0
    %1024 = vmatprep.subr.mxu0 0.0
    %1025 = vmatpush1.msra.mxu0 0.0
    %1026 = vmatprep.subr.mxu0 0.0
    %1027 = vmatpush1.msra.mxu0 0.0
    %1028 = vmatprep.subr.mxu0 0.0
    %1029 = vmatpush1.msra.mxu0 0.0
    %1030 = vmatprep.subr.mxu0 0.0
    %1031 = vmatpush1.msra.mxu0 0.0
    %1032 = vmatprep.subr.mxu0 0.0
    %1033 = vmatpush1.msra.mxu0 0.0
    %1034 = vmatprep.subr.mxu0 0.0
    %1035 = vmatpush1.msra.mxu0 0.0
    %1036 = vmatprep.subr.mxu0 0.0
    %1037 = vmatpush1.msra.mxu0 0.0
    %1038 = vmatprep.subr.mxu0 0.0
    %1039 = vmatpush1.msra.mxu0 0.0
    %1040 = vmatprep.mubr.f32.mxu0 0.0
    %1041 = vmatmul.mubr.f32.gmra.mrb[0].mxu0 %v974
    %v1042 = vpop.f32.mrb[0].mxu0
    %v1043 = vadd.f32 0.0, %v1042
    %v1044 = vpop.f32.mrb[0].mxu0
    %1045 = vdwg.mxu0
    %1046 = vrot.lane.b32.xlu0 %v169, 112
    %v1047 = vpop.permute.xlu0 %1046
    %v1050 = vsel %vm184, %v875, 0
    %1052 = vmatprep.subr.mxu0 0.0
    %1053 = vmatpush1.msra.mxu0 %v1047
    %1054 = vmatprep.subr.mxu0 0.0
    %1055 = vmatpush1.msra.mxu0 0.0
    %1056 = vmatprep.subr.mxu0 0.0
    %1057 = vmatpush1.msra.mxu0 0.0
    %1058 = vmatprep.subr.mxu0 0.0
    %1059 = vmatpush1.msra.mxu0 0.0
    %1060 = vmatprep.subr.mxu0 0.0
    %1061 = vmatpush1.msra.mxu0 0.0
    %1062 = vmatprep.subr.mxu0 0.0
    %1063 = vmatpush1.msra.mxu0 0.0
    %1064 = vmatprep.subr.mxu0 0.0
    %1065 = vmatpush1.msra.mxu0 0.0
    %1066 = vmatprep.subr.mxu0 0.0
    %1067 = vmatpush1.msra.mxu0 0.0
    %1068 = vmatprep.subr.mxu0 0.0
    %1069 = vmatpush1.msra.mxu0 0.0
    %1070 = vmatprep.subr.mxu0 0.0
    %1071 = vmatpush1.msra.mxu0 0.0
    %1072 = vmatprep.subr.mxu0 0.0
    %1073 = vmatpush1.msra.mxu0 0.0
    %1074 = vmatprep.subr.mxu0 0.0
    %1075 = vmatpush1.msra.mxu0 0.0
    %1076 = vmatprep.subr.mxu0 0.0
    %1077 = vmatpush1.msra.mxu0 0.0
    %1078 = vmatprep.subr.mxu0 0.0
    %1079 = vmatpush1.msra.mxu0 0.0
    %1080 = vmatprep.subr.mxu0 0.0
    %1081 = vmatpush1.msra.mxu0 0.0
    %1082 = vmatprep.subr.mxu0 0.0
    %1083 = vmatpush1.msra.mxu0 0.0
    %1084 = vmatprep.subr.mxu0 0.0
    %1085 = vmatpush1.msra.mxu0 0.0
    %1086 = vmatprep.subr.mxu0 0.0
    %1087 = vmatpush1.msra.mxu0 0.0
    %1088 = vmatprep.subr.mxu0 0.0
    %1089 = vmatpush1.msra.mxu0 0.0
    %1090 = vmatprep.subr.mxu0 0.0
    %1091 = vmatpush1.msra.mxu0 0.0
    %1092 = vmatprep.subr.mxu0 0.0
    %1093 = vmatpush1.msra.mxu0 0.0
    %1094 = vmatprep.subr.mxu0 0.0
    %1095 = vmatpush1.msra.mxu0 0.0
    %1096 = vmatprep.subr.mxu0 0.0
    %1097 = vmatpush1.msra.mxu0 0.0
    %1098 = vmatprep.subr.mxu0 0.0
    %1099 = vmatpush1.msra.mxu0 0.0
    %1100 = vmatprep.subr.mxu0 0.0
    %1101 = vmatpush1.msra.mxu0 0.0
    %1102 = vmatprep.subr.mxu0 0.0
    %1103 = vmatpush1.msra.mxu0 0.0
    %1104 = vmatprep.subr.mxu0 0.0
    %1105 = vmatpush1.msra.mxu0 0.0
    %1106 = vmatprep.subr.mxu0 0.0
    %1107 = vmatpush1.msra.mxu0 0.0
    %1108 = vmatprep.subr.mxu0 0.0
    %1109 = vmatpush1.msra.mxu0 0.0
    %1110 = vmatprep.subr.mxu0 0.0
    %1111 = vmatpush1.msra.mxu0 0.0
    %1112 = vmatprep.subr.mxu0 0.0
    %1113 = vmatpush1.msra.mxu0 0.0
    %1114 = vmatprep.subr.mxu0 0.0
    %1115 = vmatpush1.msra.mxu0 0.0
    %1116 = vmatprep.mubr.f32.mxu0 0.0
    %1117 = vmatmul.mubr.f32.gmra.mrb[0].mxu0 %v1050
    %v1118 = vpop.f32.mrb[0].mxu0
    %v1119 = vadd.f32 0.0, %v1118
    %v1120 = vpop.f32.mrb[0].mxu0
    %1121 = vdwg.mxu0
    %1122 = vrot.lane.b32.xlu0 %v170, 112
    %v1123 = vpop.permute.xlu0 %1122
    %v1126 = vsel %vm184, %v877, 0
    %1128 = vmatprep.subr.mxu0 0.0
    %1129 = vmatpush1.msra.mxu0 %v1123
    %1130 = vmatprep.subr.mxu0 0.0
    %1131 = vmatpush1.msra.mxu0 0.0
    %1132 = vmatprep.subr.mxu0 0.0
    %1133 = vmatpush1.msra.mxu0 0.0
    %1134 = vmatprep.subr.mxu0 0.0
    %1135 = vmatpush1.msra.mxu0 0.0
    %1136 = vmatprep.subr.mxu0 0.0
    %1137 = vmatpush1.msra.mxu0 0.0
    %1138 = vmatprep.subr.mxu0 0.0
    %1139 = vmatpush1.msra.mxu0 0.0
    %1140 = vmatprep.subr.mxu0 0.0
    %1141 = vmatpush1.msra.mxu0 0.0
    %1142 = vmatprep.subr.mxu0 0.0
    %1143 = vmatpush1.msra.mxu0 0.0
    %1144 = vmatprep.subr.mxu0 0.0
    %1145 = vmatpush1.msra.mxu0 0.0
    %1146 = vmatprep.subr.mxu0 0.0
    %1147 = vmatpush1.msra.mxu0 0.0
    %1148 = vmatprep.subr.mxu0 0.0
    %1149 = vmatpush1.msra.mxu0 0.0
    %1150 = vmatprep.subr.mxu0 0.0
    %1151 = vmatpush1.msra.mxu0 0.0
    %1152 = vmatprep.subr.mxu0 0.0
    %1153 = vmatpush1.msra.mxu0 0.0
    %1154 = vmatprep.subr.mxu0 0.0
    %1155 = vmatpush1.msra.mxu0 0.0
    %1156 = vmatprep.subr.mxu0 0.0
    %1157 = vmatpush1.msra.mxu0 0.0
    %1158 = vmatprep.subr.mxu0 0.0
    %1159 = vmatpush1.msra.mxu0 0.0
    %1160 = vmatprep.subr.mxu0 0.0
    %1161 = vmatpush1.msra.mxu0 0.0
    %1162 = vmatprep.subr.mxu0 0.0
    %1163 = vmatpush1.msra.mxu0 0.0
    %1164 = vmatprep.subr.mxu0 0.0
    %1165 = vmatpush1.msra.mxu0 0.0
    %1166 = vmatprep.subr.mxu0 0.0
    %1167 = vmatpush1.msra.mxu0 0.0
    %1168 = vmatprep.subr.mxu0 0.0
    %1169 = vmatpush1.msra.mxu0 0.0
    %1170 = vmatprep.subr.mxu0 0.0
    %1171 = vmatpush1.msra.mxu0 0.0
    %1172 = vmatprep.subr.mxu0 0.0
    %1173 = vmatpush1.msra.mxu0 0.0
    %1174 = vmatprep.subr.mxu0 0.0
    %1175 = vmatpush1.msra.mxu0 0.0
    %1176 = vmatprep.subr.mxu0 0.0
    %1177 = vmatpush1.msra.mxu0 0.0
    %1178 = vmatprep.subr.mxu0 0.0
    %1179 = vmatpush1.msra.mxu0 0.0
    %1180 = vmatprep.subr.mxu0 0.0
    %1181 = vmatpush1.msra.mxu0 0.0
    %1182 = vmatprep.subr.mxu0 0.0
    %1183 = vmatpush1.msra.mxu0 0.0
    %1184 = vmatprep.subr.mxu0 0.0
    %1185 = vmatpush1.msra.mxu0 0.0
    %1186 = vmatprep.subr.mxu0 0.0
    %1187 = vmatpush1.msra.mxu0 0.0
    %1188 = vmatprep.subr.mxu0 0.0
    %1189 = vmatpush1.msra.mxu0 0.0
    %1190 = vmatprep.subr.mxu0 0.0
    %1191 = vmatpush1.msra.mxu0 0.0
    %1192 = vmatprep.mubr.f32.mxu0 0.0
    %1193 = vmatmul.mubr.f32.gmra.mrb[0].mxu0 %v1126
    %v1194 = vpop.f32.mrb[0].mxu0
    %v1195 = vadd.f32 0.0, %v1194
    %v1196 = vpop.f32.mrb[0].mxu0
    %1197 = vdwg.mxu0
    %1198 = vrot.lane.b32.xlu0 %v171, 112
    %v1199 = vpop.permute.xlu0 %1198
    %v1202 = vsel %vm184, %v879, 0
    %1204 = vmatprep.subr.mxu0 0.0
    %1205 = vmatpush1.msra.mxu0 %v1199
    %1206 = vmatprep.subr.mxu0 0.0
    %1207 = vmatpush1.msra.mxu0 0.0
    %1208 = vmatprep.subr.mxu0 0.0
    %1209 = vmatpush1.msra.mxu0 0.0
    %1210 = vmatprep.subr.mxu0 0.0
    %1211 = vmatpush1.msra.mxu0 0.0
    %1212 = vmatprep.subr.mxu0 0.0
    %1213 = vmatpush1.msra.mxu0 0.0
    %1214 = vmatprep.subr.mxu0 0.0
    %1215 = vmatpush1.msra.mxu0 0.0
    %1216 = vmatprep.subr.mxu0 0.0
    %1217 = vmatpush1.msra.mxu0 0.0
    %1218 = vmatprep.subr.mxu0 0.0
    %1219 = vmatpush1.msra.mxu0 0.0
    %1220 = vmatprep.subr.mxu0 0.0
    %1221 = vmatpush1.msra.mxu0 0.0
    %1222 = vmatprep.subr.mxu0 0.0
    %1223 = vmatpush1.msra.mxu0 0.0
    %1224 = vmatprep.subr.mxu0 0.0
    %1225 = vmatpush1.msra.mxu0 0.0
    %1226 = vmatprep.subr.mxu0 0.0
    %1227 = vmatpush1.msra.mxu0 0.0
    %1228 = vmatprep.subr.mxu0 0.0
    %1229 = vmatpush1.msra.mxu0 0.0
    %1230 = vmatprep.subr.mxu0 0.0
    %1231 = vmatpush1.msra.mxu0 0.0
    %1232 = vmatprep.subr.mxu0 0.0
    %1233 = vmatpush1.msra.mxu0 0.0
    %1234 = vmatprep.subr.mxu0 0.0
    %1235 = vmatpush1.msra.mxu0 0.0
    %1236 = vmatprep.subr.mxu0 0.0
    %1237 = vmatpush1.msra.mxu0 0.0
    %1238 = vmatprep.subr.mxu0 0.0
    %1239 = vmatpush1.msra.mxu0 0.0
    %1240 = vmatprep.subr.mxu0 0.0
    %1241 = vmatpush1.msra.mxu0 0.0
    %1242 = vmatprep.subr.mxu0 0.0
    %1243 = vmatpush1.msra.mxu0 0.0
    %1244 = vmatprep.subr.mxu0 0.0
    %1245 = vmatpush1.msra.mxu0 0.0
    %1246 = vmatprep.subr.mxu0 0.0
    %1247 = vmatpush1.msra.mxu0 0.0
    %1248 = vmatprep.subr.mxu0 0.0
    %1249 = vmatpush1.msra.mxu0 0.0
    %1250 = vmatprep.subr.mxu0 0.0
    %1251 = vmatpush1.msra.mxu0 0.0
    %1252 = vmatprep.subr.mxu0 0.0
    %1253 = vmatpush1.msra.mxu0 0.0
    %1254 = vmatprep.subr.mxu0 0.0
    %1255 = vmatpush1.msra.mxu0 0.0
    %1256 = vmatprep.subr.mxu0 0.0
    %1257 = vmatpush1.msra.mxu0 0.0
    %1258 = vmatprep.subr.mxu0 0.0
    %1259 = vmatpush1.msra.mxu0 0.0
    %1260 = vmatprep.subr.mxu0 0.0
    %1261 = vmatpush1.msra.mxu0 0.0
    %1262 = vmatprep.subr.mxu0 0.0
    %1263 = vmatpush1.msra.mxu0 0.0
    %1264 = vmatprep.subr.mxu0 0.0
    %1265 = vmatpush1.msra.mxu0 0.0
    %1266 = vmatprep.subr.mxu0 0.0
    %1267 = vmatpush1.msra.mxu0 0.0
    %1268 = vmatprep.mubr.f32.mxu0 0.0
    %1269 = vmatmul.mubr.f32.gmra.mrb[0].mxu0 %v1202
    %v1270 = vpop.f32.mrb[0].mxu0
    %v1271 = vadd.f32 0.0, %v1270
    %v1272 = vpop.f32.mrb[0].mxu0
    %1273 = vdwg.mxu0
    %1274 = vrot.lane.b32.xlu0 %v172, 112
    %v1275 = vpop.permute.xlu0 %1274
    %v1278 = vsel %vm184, %v881, 0
    %1280 = vmatprep.subr.mxu0 0.0
    %1281 = vmatpush1.msra.mxu0 %v1275
    %1282 = vmatprep.subr.mxu0 0.0
    %1283 = vmatpush1.msra.mxu0 0.0
    %1284 = vmatprep.subr.mxu0 0.0
    %1285 = vmatpush1.msra.mxu0 0.0
    %1286 = vmatprep.subr.mxu0 0.0
    %1287 = vmatpush1.msra.mxu0 0.0
    %1288 = vmatprep.subr.mxu0 0.0
    %1289 = vmatpush1.msra.mxu0 0.0
    %1290 = vmatprep.subr.mxu0 0.0
    %1291 = vmatpush1.msra.mxu0 0.0
    %1292 = vmatprep.subr.mxu0 0.0
    %1293 = vmatpush1.msra.mxu0 0.0
    %1294 = vmatprep.subr.mxu0 0.0
    %1295 = vmatpush1.msra.mxu0 0.0
    %1296 = vmatprep.subr.mxu0 0.0
    %1297 = vmatpush1.msra.mxu0 0.0
    %1298 = vmatprep.subr.mxu0 0.0
    %1299 = vmatpush1.msra.mxu0 0.0
    %1300 = vmatprep.subr.mxu0 0.0
    %1301 = vmatpush1.msra.mxu0 0.0
    %1302 = vmatprep.subr.mxu0 0.0
    %1303 = vmatpush1.msra.mxu0 0.0
    %1304 = vmatprep.subr.mxu0 0.0
    %1305 = vmatpush1.msra.mxu0 0.0
    %1306 = vmatprep.subr.mxu0 0.0
    %1307 = vmatpush1.msra.mxu0 0.0
    %1308 = vmatprep.subr.mxu0 0.0
    %1309 = vmatpush1.msra.mxu0 0.0
    %1310 = vmatprep.subr.mxu0 0.0
    %1311 = vmatpush1.msra.mxu0 0.0
    %1312 = vmatprep.subr.mxu0 0.0
    %1313 = vmatpush1.msra.mxu0 0.0
    %1314 = vmatprep.subr.mxu0 0.0
    %1315 = vmatpush1.msra.mxu0 0.0
    %1316 = vmatprep.subr.mxu0 0.0
    %1317 = vmatpush1.msra.mxu0 0.0
    %1318 = vmatprep.subr.mxu0 0.0
    %1319 = vmatpush1.msra.mxu0 0.0
    %1320 = vmatprep.subr.mxu0 0.0
    %1321 = vmatpush1.msra.mxu0 0.0
    %1322 = vmatprep.subr.mxu0 0.0
    %1323 = vmatpush1.msra.mxu0 0.0
    %1324 = vmatprep.subr.mxu0 0.0
    %1325 = vmatpush1.msra.mxu0 0.0
    %1326 = vmatprep.subr.mxu0 0.0
    %1327 = vmatpush1.msra.mxu0 0.0
    %1328 = vmatprep.subr.mxu0 0.0
    %1329 = vmatpush1.msra.mxu0 0.0
    %1330 = vmatprep.subr.mxu0 0.0
    %1331 = vmatpush1.msra.mxu0 0.0
    %1332 = vmatprep.subr.mxu0 0.0
    %1333 = vmatpush1.msra.mxu0 0.0
    %1334 = vmatprep.subr.mxu0 0.0
    %1335 = vmatpush1.msra.mxu0 0.0
    %1336 = vmatprep.subr.mxu0 0.0
    %1337 = vmatpush1.msra.mxu0 0.0
    %1338 = vmatprep.subr.mxu0 0.0
    %1339 = vmatpush1.msra.mxu0 0.0
    %1340 = vmatprep.subr.mxu0 0.0
    %1341 = vmatpush1.msra.mxu0 0.0
    %1342 = vmatprep.subr.mxu0 0.0
    %1343 = vmatpush1.msra.mxu0 0.0
    %1344 = vmatprep.mubr.f32.mxu0 0.0
    %1345 = vmatmul.mubr.f32.gmra.mrb[0].mxu0 %v1278
    %v1346 = vpop.f32.mrb[0].mxu0
    %v1347 = vadd.f32 0.0, %v1346
    %v1348 = vpop.f32.mrb[0].mxu0
    %1349 = vdwg.mxu0
    %1350 = vrot.lane.b32.xlu0 %v173, 112
    %v1351 = vpop.permute.xlu0 %1350
    %v1354 = vsel %vm184, %v883, 0
    %1356 = vmatprep.subr.mxu0 0.0
    %1357 = vmatpush1.msra.mxu0 %v1351
    %1358 = vmatprep.subr.mxu0 0.0
    %1359 = vmatpush1.msra.mxu0 0.0
    %1360 = vmatprep.subr.mxu0 0.0
    %1361 = vmatpush1.msra.mxu0 0.0
    %1362 = vmatprep.subr.mxu0 0.0
    %1363 = vmatpush1.msra.mxu0 0.0
    %1364 = vmatprep.subr.mxu0 0.0
    %1365 = vmatpush1.msra.mxu0 0.0
    %1366 = vmatprep.subr.mxu0 0.0
    %1367 = vmatpush1.msra.mxu0 0.0
    %1368 = vmatprep.subr.mxu0 0.0
    %1369 = vmatpush1.msra.mxu0 0.0
    %1370 = vmatprep.subr.mxu0 0.0
    %1371 = vmatpush1.msra.mxu0 0.0
    %1372 = vmatprep.subr.mxu0 0.0
    %1373 = vmatpush1.msra.mxu0 0.0
    %1374 = vmatprep.subr.mxu0 0.0
    %1375 = vmatpush1.msra.mxu0 0.0
    %1376 = vmatprep.subr.mxu0 0.0
    %1377 = vmatpush1.msra.mxu0 0.0
    %1378 = vmatprep.subr.mxu0 0.0
    %1379 = vmatpush1.msra.mxu0 0.0
    %1380 = vmatprep.subr.mxu0 0.0
    %1381 = vmatpush1.msra.mxu0 0.0
    %1382 = vmatprep.subr.mxu0 0.0
    %1383 = vmatpush1.msra.mxu0 0.0
    %1384 = vmatprep.subr.mxu0 0.0
    %1385 = vmatpush1.msra.mxu0 0.0
    %1386 = vmatprep.subr.mxu0 0.0
    %1387 = vmatpush1.msra.mxu0 0.0
    %1388 = vmatprep.subr.mxu0 0.0
    %1389 = vmatpush1.msra.mxu0 0.0
    %1390 = vmatprep.subr.mxu0 0.0
    %1391 = vmatpush1.msra.mxu0 0.0
    %1392 = vmatprep.subr.mxu0 0.0
    %1393 = vmatpush1.msra.mxu0 0.0
    %1394 = vmatprep.subr.mxu0 0.0
    %1395 = vmatpush1.msra.mxu0 0.0
    %1396 = vmatprep.subr.mxu0 0.0
    %1397 = vmatpush1.msra.mxu0 0.0
    %1398 = vmatprep.subr.mxu0 0.0
    %1399 = vmatpush1.msra.mxu0 0.0
    %1400 = vmatprep.subr.mxu0 0.0
    %1401 = vmatpush1.msra.mxu0 0.0
    %1402 = vmatprep.subr.mxu0 0.0
    %1403 = vmatpush1.msra.mxu0 0.0
    %1404 = vmatprep.subr.mxu0 0.0
    %1405 = vmatpush1.msra.mxu0 0.0
    %1406 = vmatprep.subr.mxu0 0.0
    %1407 = vmatpush1.msra.mxu0 0.0
    %1408 = vmatprep.subr.mxu0 0.0
    %1409 = vmatpush1.msra.mxu0 0.0
    %1410 = vmatprep.subr.mxu0 0.0
    %1411 = vmatpush1.msra.mxu0 0.0
    %1412 = vmatprep.subr.mxu0 0.0
    %1413 = vmatpush1.msra.mxu0 0.0
    %1414 = vmatprep.subr.mxu0 0.0
    %1415 = vmatpush1.msra.mxu0 0.0
    %1416 = vmatprep.subr.mxu0 0.0
    %1417 = vmatpush1.msra.mxu0 0.0
    %1418 = vmatprep.subr.mxu0 0.0
    %1419 = vmatpush1.msra.mxu0 0.0
    %1420 = vmatprep.mubr.f32.mxu0 0.0
    %1421 = vmatmul.mubr.f32.gmra.mrb[0].mxu0 %v1354
    %v1422 = vpop.f32.mrb[0].mxu0
    %v1423 = vadd.f32 0.0, %v1422
    %v1424 = vpop.f32.mrb[0].mxu0
    %1425 = vdwg.mxu0
    %1426 = vrot.lane.b32.xlu0 %v174, 112
    %v1427 = vpop.permute.xlu0 %1426
    %v1430 = vsel %vm184, %v885, 0
    %1432 = vmatprep.subr.mxu0 0.0
    %1433 = vmatpush1.msra.mxu0 %v1427
    %1434 = vmatprep.subr.mxu0 0.0
    %1435 = vmatpush1.msra.mxu0 0.0
    %1436 = vmatprep.subr.mxu0 0.0
    %1437 = vmatpush1.msra.mxu0 0.0
    %1438 = vmatprep.subr.mxu0 0.0
    %1439 = vmatpush1.msra.mxu0 0.0
    %1440 = vmatprep.subr.mxu0 0.0
    %1441 = vmatpush1.msra.mxu0 0.0
    %1442 = vmatprep.subr.mxu0 0.0
    %1443 = vmatpush1.msra.mxu0 0.0
    %1444 = vmatprep.subr.mxu0 0.0
    %1445 = vmatpush1.msra.mxu0 0.0
    %1446 = vmatprep.subr.mxu0 0.0
    %1447 = vmatpush1.msra.mxu0 0.0
    %1448 = vmatprep.subr.mxu0 0.0
    %1449 = vmatpush1.msra.mxu0 0.0
    %1450 = vmatprep.subr.mxu0 0.0
    %1451 = vmatpush1.msra.mxu0 0.0
    %1452 = vmatprep.subr.mxu0 0.0
    %1453 = vmatpush1.msra.mxu0 0.0
    %1454 = vmatprep.subr.mxu0 0.0
    %1455 = vmatpush1.msra.mxu0 0.0
    %1456 = vmatprep.subr.mxu0 0.0
    %1457 = vmatpush1.msra.mxu0 0.0
    %1458 = vmatprep.subr.mxu0 0.0
    %1459 = vmatpush1.msra.mxu0 0.0
    %1460 = vmatprep.subr.mxu0 0.0
    %1461 = vmatpush1.msra.mxu0 0.0
    %1462 = vmatprep.subr.mxu0 0.0
    %1463 = vmatpush1.msra.mxu0 0.0
    %1464 = vmatprep.subr.mxu0 0.0
    %1465 = vmatpush1.msra.mxu0 0.0
    %1466 = vmatprep.subr.mxu0 0.0
    %1467 = vmatpush1.msra.mxu0 0.0
    %1468 = vmatprep.subr.mxu0 0.0
    %1469 = vmatpush1.msra.mxu0 0.0
    %1470 = vmatprep.subr.mxu0 0.0
    %1471 = vmatpush1.msra.mxu0 0.0
    %1472 = vmatprep.subr.mxu0 0.0
    %1473 = vmatpush1.msra.mxu0 0.0
    %1474 = vmatprep.subr.mxu0 0.0
    %1475 = vmatpush1.msra.mxu0 0.0
    %1476 = vmatprep.subr.mxu0 0.0
    %1477 = vmatpush1.msra.mxu0 0.0
    %1478 = vmatprep.subr.mxu0 0.0
    %1479 = vmatpush1.msra.mxu0 0.0
    %1480 = vmatprep.subr.mxu0 0.0
    %1481 = vmatpush1.msra.mxu0 0.0
    %1482 = vmatprep.subr.mxu0 0.0
    %1483 = vmatpush1.msra.mxu0 0.0
    %1484 = vmatprep.subr.mxu0 0.0
    %1485 = vmatpush1.msra.mxu0 0.0
    %1486 = vmatprep.subr.mxu0 0.0
    %1487 = vmatpush1.msra.mxu0 0.0
    %1488 = vmatprep.subr.mxu0 0.0
    %1489 = vmatpush1.msra.mxu0 0.0
    %1490 = vmatprep.subr.mxu0 0.0
    %1491 = vmatpush1.msra.mxu0 0.0
    %1492 = vmatprep.subr.mxu0 0.0
    %1493 = vmatpush1.msra.mxu0 0.0
    %1494 = vmatprep.subr.mxu0 0.0
    %1495 = vmatpush1.msra.mxu0 0.0
    %1496 = vmatprep.mubr.f32.mxu0 0.0
    %1497 = vmatmul.mubr.f32.gmra.mrb[0].mxu0 %v1430
    %v1498 = vpop.f32.mrb[0].mxu0
    %v1499 = vadd.f32 0.0, %v1498
    %v1500 = vpop.f32.mrb[0].mxu0
    %1501 = vdwg.mxu0
    %1502 = vst.msk [vmem:[#allocation3] sm:$0xff] %vm184, %v967
    %1503 = vst.msk [vmem:[#allocation3 + $0x8] sm:$0xff] %vm184, %v1043
    %1506 = vrot.lane.b32.xlu0 %v1119, 8
    %v1507 = vpop.permute.xlu0 %1506
    %1508 = vrot.lane.b32.xlu0 %v1195, 8
    %v1509 = vpop.permute.xlu0 %1508
    %vm1512 = vcmask 130112
    %1513 = vst.msk [vmem:[#allocation3] sm:$0xff] %vm1512, %v1507
    %1514 = vst.msk [vmem:[#allocation3 + $0x8] sm:$0xff] %vm1512, %v1509
    %1517 = vrot.lane.b32.xlu0 %v1271, 16
    %v1518 = vpop.permute.xlu0 %1517
    %1519 = vrot.lane.b32.xlu0 %v1347, 16
    %v1520 = vpop.permute.xlu0 %1519
    %vm1523 = vcmask 195712
    %1524 = vst.msk [vmem:[#allocation3] sm:$0xff] %vm1523, %v1518
    %1525 = vst.msk [vmem:[#allocation3 + $0x8] sm:$0xff] %vm1523, %v1520
    %1528 = vrot.lane.b32.xlu0 %v1423, 24
    %v1529 = vpop.permute.xlu0 %1528
    %1530 = vrot.lane.b32.xlu0 %v1499, 24
    %v1531 = vpop.permute.xlu0 %1530
    %vm1534 = vcmask 261312
    %1535 = vst.msk [vmem:[#allocation3] sm:$0xff] %vm1534, %v1529
    %1536 = vst.msk [vmem:[#allocation3 + $0x8] sm:$0xff] %vm1534, %v1531
    %v1537 = vld [vmem:[#allocation3] sm:$0xff]
    %v1538 = vld [vmem:[#allocation3 + $0x8] sm:$0xff]
    %v1539 = vlaneseq
    %v1540 = vshrl.u32 %v1539, 7
    %v1541 = vsub.s32 1, %v1540
    %v1542 = vrot.slane %v43, %v1541
    %1547 = vrot.lane.b32.xlu0 %v44, 32
    %v1548 = vpop.permute.xlu0 %1547
    %1549 = vrot.lane.b32.xlu0 %v46, 32
    %v1550 = vpop.permute.xlu0 %1549
    %1551 = vrot.lane.b32.xlu0 %v48, 32
    %v1552 = vpop.permute.xlu0 %1551
    %1553 = vrot.lane.b32.xlu0 %v50, 32
    %v1554 = vpop.permute.xlu0 %1553
    %v1560 = vsel %vm56, %v1537, 0
    %v1563 = vsel %vm56, %v1538, 0
    %1565 = vmatprep.subr.mxu0 0.0
    %1566 = vmatpush1.msra.mxu0 %v1548
    %1567 = vmatprep.subr.mxu0 0.0
    %1568 = vmatpush1.msra.mxu0 %v1550
    %1569 = vmatprep.subr.mxu0 0.0
    %1570 = vmatpush1.msra.mxu0 %v1552
    %1571 = vmatprep.subr.mxu0 0.0
    %1572 = vmatpush1.msra.mxu0 %v1554
    %1573 = vmatprep.subr.mxu0 0.0
    %1574 = vmatpush1.msra.mxu0 0.0
    %1575 = vmatprep.subr.mxu0 0.0
    %1576 = vmatpush1.msra.mxu0 0.0
    %1577 = vmatprep.subr.mxu0 0.0
    %1578 = vmatpush1.msra.mxu0 0.0
    %1579 = vmatprep.subr.mxu0 0.0
    %1580 = vmatpush1.msra.mxu0 0.0
    %1581 = vmatprep.subr.mxu0 0.0
    %1582 = vmatpush1.msra.mxu0 0.0
    %1583 = vmatprep.subr.mxu0 0.0
    %1584 = vmatpush1.msra.mxu0 0.0
    %1585 = vmatprep.subr.mxu0 0.0
    %1586 = vmatpush1.msra.mxu0 0.0
    %1587 = vmatprep.subr.mxu0 0.0
    %1588 = vmatpush1.msra.mxu0 0.0
    %1589 = vmatprep.subr.mxu0 0.0
    %1590 = vmatpush1.msra.mxu0 0.0
    %1591 = vmatprep.subr.mxu0 0.0
    %1592 = vmatpush1.msra.mxu0 0.0
    %1593 = vmatprep.subr.mxu0 0.0
    %1594 = vmatpush1.msra.mxu0 0.0
    %1595 = vmatprep.subr.mxu0 0.0
    %1596 = vmatpush1.msra.mxu0 0.0
    %1597 = vmatprep.subr.mxu0 0.0
    %1598 = vmatpush1.msra.mxu0 0.0
    %1599 = vmatprep.subr.mxu0 0.0
    %1600 = vmatpush1.msra.mxu0 0.0
    %1601 = vmatprep.subr.mxu0 0.0
    %1602 = vmatpush1.msra.mxu0 0.0
    %1603 = vmatprep.subr.mxu0 0.0
    %1604 = vmatpush1.msra.mxu0 0.0
    %1605 = vmatprep.subr.mxu0 0.0
    %1606 = vmatpush1.msra.mxu0 0.0
    %1607 = vmatprep.subr.mxu0 0.0
    %1608 = vmatpush1.msra.mxu0 0.0
    %1609 = vmatprep.subr.mxu0 0.0
    %1610 = vmatpush1.msra.mxu0 0.0
    %1611 = vmatprep.subr.mxu0 0.0
    %1612 = vmatpush1.msra.mxu0 0.0
    %1613 = vmatprep.subr.mxu0 0.0
    %1614 = vmatpush1.msra.mxu0 0.0
    %1615 = vmatprep.subr.mxu0 0.0
    %1616 = vmatpush1.msra.mxu0 0.0
    %1617 = vmatprep.subr.mxu0 0.0
    %1618 = vmatpush1.msra.mxu0 0.0
    %1619 = vmatprep.subr.mxu0 0.0
    %1620 = vmatpush1.msra.mxu0 0.0
    %1621 = vmatprep.subr.mxu0 0.0
    %1622 = vmatpush1.msra.mxu0 0.0
    %1623 = vmatprep.subr.mxu0 0.0
    %1624 = vmatpush1.msra.mxu0 0.0
    %1625 = vmatprep.subr.mxu0 0.0
    %1626 = vmatpush1.msra.mxu0 0.0
    %1627 = vmatprep.subr.mxu0 0.0
    %1628 = vmatpush1.msra.mxu0 0.0
    %1629 = vmatprep.mubr.f32.mxu0 0.0
    %1630 = vmatmul.mubr.f32.gmra.mrb[0].mxu0 %v1560
    %v1631 = vpop.f32.mrb[0].mxu0
    %v1632 = vadd.f32 %v1542, %v1631
    %v1633 = vpop.f32.mrb[0].mxu0
    %1634 = vmatprep.mubr.f32.mxu0 0.0
    %1635 = vmatmul.mubr.f32.gmra.mrb[0].mxu0 %v1563
    %v1636 = vpop.f32.mrb[0].mxu0
    %v1637 = vadd.f32 %v1542, %v1636
    %v1638 = vpop.f32.mrb[0].mxu0
    %1639 = vdwg.mxu0
    %v1640 = vadd.f32 %v1632, %v39
    %v1641 = vadd.f32 %v1637, %v40
    %v1642 = vsel %vm56, %v1640, 0.0
    %1643 = vadd.xlane.f32.xlu0 %v1642
    %v1644 = vpop.xlane.xlu0 %1643
    %v1645 = vsel %vm56, %v1641, 0.0
    %1646 = vadd.xlane.f32.xlu0 %v1645
    %v1647 = vpop.xlane.xlu0 %1646
    %v1648 = vrcp.pop 32.0
    %v1649 = vmul.f32 %v1644, %v1648
    %v1650 = vmul.f32 %v1647, %v1648
    %v1651 = vsub.f32 %v1640, %v1649
    %v1652 = vsub.f32 %v1641, %v1650
    %v1653 = vmul.f32 %v1651, %v1651
    %v1654 = vmul.f32 %v1652, %v1652
    %v1655 = vsel %vm56, %v1653, 0.0
    %1656 = vadd.xlane.f32.xlu0 %v1655
    %v1657 = vpop.xlane.xlu0 %1656
    %v1658 = vsel %vm56, %v1654, 0.0
    %1659 = vadd.xlane.f32.xlu0 %v1658
    %v1660 = vpop.xlane.xlu0 %1659
    %v1661 = vmul.f32 %v1657, %v1648
    %v1662 = vmul.f32 %v1660, %v1648
    %v1663 = vadd.f32 %v1661, 1e-05
    %v1664 = vadd.f32 %v1662, 1e-05
    %v1665 = vrsqrt.pop %v1663
    %v1666 = vrsqrt.pop %v1664
    %v1667 = vmul.f32 %v1651, %v1665
    %v1668 = vmul.f32 %v1652, %v1666
    %v1669 = vlaneseq
    %v1670 = vshrl.u32 %v1669, 7
    %v1671 = vsub.s32 2, %v1670
    %v1672 = vrot.slane %v43, %v1671
    %v1673 = vmul.f32 %v1667, %v1672
    %v1674 = vmul.f32 %v1668, %v1672
    %v1675 = vlaneseq
    %v1676 = vshrl.u32 %v1675, 7
    %v1677 = vsub.s32 3, %v1676
    %v1678 = vrot.slane %v43, %v1677
    %v1679 = vadd.f32 %v1673, %v1678
    %v1680 = vadd.f32 %v1674, %v1678
    %1682 = vset.pattern.permute.xlu0 0
    %1683 = vperm.xlu0 %1682, %v41
    %v1684 = vpop.permute.xlu0 %1683
    %1687 = vset.pattern.permute.xlu0 0
    %1688 = vperm.xlu0 %1687, %v42
    %v1689 = vpop.permute.xlu0 %1688
    %v1691 = vmul.f32 %v1679, %v1684
    %v1692 = vmul.f32 %v1680, %v1689
    %v1693 = vlaneseq
    %v1694 = vshrl.u32 %v1693, 7
    %v1695 = vsub.s32 4, %v1694
    %v1696 = vrot.slane %v43, %v1695
    %v1698 = vsel %vm56, %v1691, 0
    %v1701 = vsel %vm56, %v1692, 0
    %1703 = vmatprep.subr.mxu0 0.0
    %1704 = vmatpush1.msra.mxu0 %v45
    %1705 = vmatprep.subr.mxu0 0.0
    %1706 = vmatpush1.msra.mxu0 %v47
    %1707 = vmatprep.subr.mxu0 0.0
    %1708 = vmatpush1.msra.mxu0 %v49
    %1709 = vmatprep.subr.mxu0 0.0
    %1710 = vmatpush1.msra.mxu0 %v51
    %1711 = vmatprep.subr.mxu0 0.0
    %1712 = vmatpush1.msra.mxu0 0.0
    %1713 = vmatprep.subr.mxu0 0.0
    %1714 = vmatpush1.msra.mxu0 0.0
    %1715 = vmatprep.subr.mxu0 0.0
    %1716 = vmatpush1.msra.mxu0 0.0
    %1717 = vmatprep.subr.mxu0 0.0
    %1718 = vmatpush1.msra.mxu0 0.0
    %1719 = vmatprep.subr.mxu0 0.0
    %1720 = vmatpush1.msra.mxu0 0.0
    %1721 = vmatprep.subr.mxu0 0.0
    %1722 = vmatpush1.msra.mxu0 0.0
    %1723 = vmatprep.subr.mxu0 0.0
    %1724 = vmatpush1.msra.mxu0 0.0
    %1725 = vmatprep.subr.mxu0 0.0
    %1726 = vmatpush1.msra.mxu0 0.0
    %1727 = vmatprep.subr.mxu0 0.0
    %1728 = vmatpush1.msra.mxu0 0.0
    %1729 = vmatprep.subr.mxu0 0.0
    %1730 = vmatpush1.msra.mxu0 0.0
    %1731 = vmatprep.subr.mxu0 0.0
    %1732 = vmatpush1.msra.mxu0 0.0
    %1733 = vmatprep.subr.mxu0 0.0
    %1734 = vmatpush1.msra.mxu0 0.0
    %1735 = vmatprep.subr.mxu0 0.0
    %1736 = vmatpush1.msra.mxu0 0.0
    %1737 = vmatprep.subr.mxu0 0.0
    %1738 = vmatpush1.msra.mxu0 0.0
    %1739 = vmatprep.subr.mxu0 0.0
    %1740 = vmatpush1.msra.mxu0 0.0
    %1741 = vmatprep.subr.mxu0 0.0
    %1742 = vmatpush1.msra.mxu0 0.0
    %1743 = vmatprep.subr.mxu0 0.0
    %1744 = vmatpush1.msra.mxu0 0.0
    %1745 = vmatprep.subr.mxu0 0.0
    %1746 = vmatpush1.msra.mxu0 0.0
    %1747 = vmatprep.subr.mxu0 0.0
    %1748 = vmatpush1.msra.mxu0 0.0
    %1749 = vmatprep.subr.mxu0 0.0
    %1750 = vmatpush1.msra.mxu0 0.0
    %1751 = vmatprep.subr.mxu0 0.0
    %1752 = vmatpush1.msra.mxu0 0.0
    %1753 = vmatprep.subr.mxu0 0.0
    %1754 = vmatpush1.msra.mxu0 0.0
    %1755 = vmatprep.subr.mxu0 0.0
    %1756 = vmatpush1.msra.mxu0 0.0
    %1757 = vmatprep.subr.mxu0 0.0
    %1758 = vmatpush1.msra.mxu0 0.0
    %1759 = vmatprep.subr.mxu0 0.0
    %1760 = vmatpush1.msra.mxu0 0.0
    %1761 = vmatprep.subr.mxu0 0.0
    %1762 = vmatpush1.msra.mxu0 0.0
    %1763 = vmatprep.subr.mxu0 0.0
    %1764 = vmatpush1.msra.mxu0 0.0
    %1765 = vmatprep.subr.mxu0 0.0
    %1766 = vmatpush1.msra.mxu0 0.0
    %1767 = vmatprep.mubr.f32.mxu0 0.0
    %1768 = vmatmul.mubr.f32.gmra.mrb[0].mxu0 %v1698
    %v1769 = vpop.f32.mrb[0].mxu0
    %v1770 = vadd.f32 %v1696, %v1769
    %v1771 = vpop.f32.mrb[0].mxu0
    %1772 = vmatprep.mubr.f32.mxu0 0.0
    %1773 = vmatmul.mubr.f32.gmra.mrb[0].mxu0 %v1701
    %v1774 = vpop.f32.mrb[0].mxu0
    %v1775 = vadd.f32 %v1696, %v1774
    %v1776 = vpop.f32.mrb[0].mxu0
    %1777 = vdwg.mxu0
    %v1778 = vmax.f32 %v1770, 0.0
    %v1779 = vmax.f32 %v1775, 0.0
    %v1780 = vld [vmem:[%s4] sm:$0xff]
    %v1781 = vld [vmem:[%s4 + $0x8] sm:$0xff]
    %v1782 = vld [vmem:[%s4 + $0x10] sm:$0xff]
    %v1783 = vld [vmem:[%s4 + $0x18] sm:$0xff]
    %v1784 = vld [vmem:[%s4 + $0x20] sm:$0xff]
    %v1785 = vld [vmem:[%s4 + $0x28] sm:$0xff]
    %v1786 = vld [vmem:[%s4 + $0x30] sm:$0xff]
    %v1787 = vld [vmem:[%s4 + $0x38] sm:$0xff]
    %v1788 = vlaneseq
    %v1789 = vshrl.u32 %v1788, 7
    %v1790 = vsub.s32 5, %v1789
    %v1791 = vrot.slane %v43, %v1790
    %vm1792 = vcmask 523264
    %v1794 = vsel %vm1792, %v1778, 0
    %v1797 = vsel %vm1792, %v1779, 0
    %1799 = vmatprep.subr.mxu0 0.0
    %1800 = vmatpush1.msra.mxu0 %v1780
    %1801 = vmatprep.subr.mxu0 0.0
    %1802 = vmatpush1.msra.mxu0 %v1781
    %1803 = vmatprep.subr.mxu0 0.0
    %1804 = vmatpush1.msra.mxu0 %v1782
    %1805 = vmatprep.subr.mxu0 0.0
    %1806 = vmatpush1.msra.mxu0 %v1783
    %1807 = vmatprep.subr.mxu0 0.0
    %1808 = vmatpush1.msra.mxu0 %v1784
    %1809 = vmatprep.subr.mxu0 0.0
    %1810 = vmatpush1.msra.mxu0 %v1785
    %1811 = vmatprep.subr.mxu0 0.0
    %1812 = vmatpush1.msra.mxu0 %v1786
    %1813 = vmatprep.subr.mxu0 0.0
    %1814 = vmatpush1.msra.mxu0 %v1787
    %1815 = vmatprep.subr.mxu0 0.0
    %1816 = vmatpush1.msra.mxu0 0.0
    %1817 = vmatprep.subr.mxu0 0.0
    %1818 = vmatpush1.msra.mxu0 0.0
    %1819 = vmatprep.subr.mxu0 0.0
    %1820 = vmatpush1.msra.mxu0 0.0
    %1821 = vmatprep.subr.mxu0 0.0
    %1822 = vmatpush1.msra.mxu0 0.0
    %1823 = vmatprep.subr.mxu0 0.0
    %1824 = vmatpush1.msra.mxu0 0.0
    %1825 = vmatprep.subr.mxu0 0.0
    %1826 = vmatpush1.msra.mxu0 0.0
    %1827 = vmatprep.subr.mxu0 0.0
    %1828 = vmatpush1.msra.mxu0 0.0
    %1829 = vmatprep.subr.mxu0 0.0
    %1830 = vmatpush1.msra.mxu0 0.0
    %1831 = vmatprep.subr.mxu0 0.0
    %1832 = vmatpush1.msra.mxu0 0.0
    %1833 = vmatprep.subr.mxu0 0.0
    %1834 = vmatpush1.msra.mxu0 0.0
    %1835 = vmatprep.subr.mxu0 0.0
    %1836 = vmatpush1.msra.mxu0 0.0
    %1837 = vmatprep.subr.mxu0 0.0
    %1838 = vmatpush1.msra.mxu0 0.0
    %1839 = vmatprep.subr.mxu0 0.0
    %1840 = vmatpush1.msra.mxu0 0.0
    %1841 = vmatprep.subr.mxu0 0.0
    %1842 = vmatpush1.msra.mxu0 0.0
    %1843 = vmatprep.subr.mxu0 0.0
    %1844 = vmatpush1.msra.mxu0 0.0
    %1845 = vmatprep.subr.mxu0 0.0
    %1846 = vmatpush1.msra.mxu0 0.0
    %1847 = vmatprep.subr.mxu0 0.0
    %1848 = vmatpush1.msra.mxu0 0.0
    %1849 = vmatprep.subr.mxu0 0.0
    %1850 = vmatpush1.msra.mxu0 0.0
    %1851 = vmatprep.subr.mxu0 0.0
    %1852 = vmatpush1.msra.mxu0 0.0
    %1853 = vmatprep.subr.mxu0 0.0
    %1854 = vmatpush1.msra.mxu0 0.0
    %1855 = vmatprep.subr.mxu0 0.0
    %1856 = vmatpush1.msra.mxu0 0.0
    %1857 = vmatprep.subr.mxu0 0.0
    %1858 = vmatpush1.msra.mxu0 0.0
    %1859 = vmatprep.subr.mxu0 0.0
    %1860 = vmatpush1.msra.mxu0 0.0
    %1861 = vmatprep.subr.mxu0 0.0
    %1862 = vmatpush1.msra.mxu0 0.0
    %1863 = vmatprep.mubr.f32.mxu0 0.0
    %1864 = vmatmul.mubr.f32.gmra.mrb[0].mxu0 %v1794
    %v1865 = vpop.f32.mrb[0].mxu0
    %v1866 = vadd.f32 %v1791, %v1865
    %v1867 = vpop.f32.mrb[0].mxu0
    %1868 = vmatprep.mubr.f32.mxu0 0.0
    %1869 = vmatmul.mubr.f32.gmra.mrb[0].mxu0 %v1797
    %v1870 = vpop.f32.mrb[0].mxu0
    %v1871 = vadd.f32 %v1791, %v1870
    %v1872 = vpop.f32.mrb[0].mxu0
    %1873 = vdwg.mxu0
    %v1874 = vadd.f32 %v1866, %v1691
    %v1875 = vadd.f32 %v1871, %v1692
    %v1876 = vsel %vm56, %v1874, 0.0
    %1877 = vadd.xlane.f32.xlu0 %v1876
    %v1878 = vpop.xlane.xlu0 %1877
    %v1879 = vsel %vm56, %v1875, 0.0
    %1880 = vadd.xlane.f32.xlu0 %v1879
    %v1881 = vpop.xlane.xlu0 %1880
    %v1882 = vmul.f32 %v1878, %v1648
    %v1883 = vmul.f32 %v1881, %v1648
    %v1884 = vsub.f32 %v1874, %v1882
    %v1885 = vsub.f32 %v1875, %v1883
    %v1886 = vmul.f32 %v1884, %v1884
    %v1887 = vmul.f32 %v1885, %v1885
    %v1888 = vsel %vm56, %v1886, 0.0
    %1889 = vadd.xlane.f32.xlu0 %v1888
    %v1890 = vpop.xlane.xlu0 %1889
    %v1891 = vsel %vm56, %v1887, 0.0
    %1892 = vadd.xlane.f32.xlu0 %v1891
    %v1893 = vpop.xlane.xlu0 %1892
    %v1894 = vmul.f32 %v1890, %v1648
    %v1895 = vmul.f32 %v1893, %v1648
    %v1896 = vadd.f32 %v1894, 1e-05
    %v1897 = vadd.f32 %v1895, 1e-05
    %v1898 = vrsqrt.pop %v1896
    %v1899 = vrsqrt.pop %v1897
    %v1900 = vmul.f32 %v1884, %v1898
    %v1901 = vmul.f32 %v1885, %v1899
    %v1902 = vlaneseq
    %v1903 = vshrl.u32 %v1902, 7
    %v1904 = vsub.s32 6, %v1903
    %v1905 = vrot.slane %v43, %v1904
    %v1906 = vmul.f32 %v1900, %v1905
    %v1907 = vmul.f32 %v1901, %v1905
    %v1908 = vlaneseq
    %v1909 = vshrl.u32 %v1908, 7
    %v1910 = vsub.s32 7, %v1909
    %v1911 = vrot.slane %v43, %v1910
    %v1912 = vadd.f32 %v1906, %v1911
    %v1913 = vadd.f32 %v1907, %v1911
    %v1914 = vmul.f32 %v1912, %v1684
    %v1915 = vmul.f32 %v1913, %v1689
    %1916 = vst.msk [vmem:[#allocation7] sm:$0xff] %vm56, %v1914
    %1917 = vst.msk [vmem:[#allocation7 + $0x8] sm:$0xff] %vm56, %v1915
    // Predicated region
    $region30: #{encoder_layer.1} parent=1 // pred_check
      _
    $region31: #{encoder_layer.1} parent=1 // pred_check_branch
      %1919 = sbr.rel (0) target = $region33
    $region32: #{encoder_layer.1} parent=1 // pred_region
      %s1921 = ssub.s32 256, 256
      %1922 = vsyncadd [#allocation6], %s1921
      %s1923 = sshll.u32 [#allocation7], 4
      %s1924 = int_to_ptr.vmem [resolvable:$true] %s1923
      %1929 = dma.vmem_to_hbm [thread:$0]  %s1924, 256, %s6, [#allocation6], 128, 128, 8
    $region33: #{encoder_layer.1} parent=1 // pred_fallthru
      _
    // Predicated region
    $region34: #{encoder_layer.1} parent=1 // pred_check
      _
    $region35: #{encoder_layer.1} parent=1 // pred_check_branch
      %1931 = sbr.rel (0) target = $region37
    $region36: #{encoder_layer.1} parent=1 // pred_region
      %s1933 = ssub.s32 1024, 1024
      %1934 = vsyncadd [#allocation9], %s1933
      %s1935 = sshll.u32 [#allocation8], 4
      %s1936 = int_to_ptr.vmem [resolvable:$true] %s1935
      %1941 = dma.vmem_to_hbm [thread:$0]  %s1936, 1024, %s7, [#allocation9], 128, 128, 8
    $region37: #{encoder_layer.1} parent=1 // pred_fallthru
      _
    // Predicated region
    $region38: #{encoder_layer.1} parent=1 // pred_check
      _
    $region39: #{encoder_layer.1} parent=1 // pred_check_branch
      %1943 = sbr.rel (0) target = $region41
    $region40: #{encoder_layer.1} parent=1 // pred_region
      %1944 = dma.done [#allocation6], 256
    $region41: #{encoder_layer.1} parent=1 // pred_fallthru
      _
    // Predicated region
    $region42: #{encoder_layer.1} parent=1 // pred_check
      _
    $region43: #{encoder_layer.1} parent=1 // pred_check_branch
      %1946 = sbr.rel (0) target = $region45
    $region44: #{encoder_layer.1} parent=1 // pred_region
      %1947 = dma.done [#allocation9], 1024
    $region45: #{encoder_layer.1} parent=1 // pred_fallthru
      _
    %1948 = vsyncpa [#allocation5], 1
    %1949 = vsyncpa [#allocation6], 1
    %1950 = vsyncpa [#allocation9], 1

</llo_original>
